<compile_context>
chip_gen: v6e
topology: v6e:2x2x1
jax: 0.10.0
libtpu: 0.0.40
codegen_flags: <defaults>
</compile_context>

<pallas_src>
import functools

import jax
import jax.numpy as jnp
from jax.experimental import pallas as pl
from jax.experimental.pallas import tpu as pltpu


def _decoder_kernel(tokens_ref, emb_hbm, h0_ref, c0_ref, w_ref, b_ref,
                    w_out_ref, b_out_ref,
                    logp_ref, h_out_ref, c_out_ref,
                    x_scr, xg_scr, m_scr, l_scr, gather_sem,
                    *, num_layers, hidden_size, tv):
    H = hidden_size
    B = xg_scr.shape[0]
    j = pl.program_id(0)

    def lstm_cell(gates, c_prev):
        # PyTorch gate order: i, f, g, o.  H % 128 == 0 -> lane-aligned slices.
        i_g = jax.nn.sigmoid(gates[:, 0 * H:1 * H])
        f_g = jax.nn.sigmoid(gates[:, 1 * H:2 * H])
        g_g = jnp.tanh(gates[:, 2 * H:3 * H])
        o_g = jax.nn.sigmoid(gates[:, 3 * H:4 * H])
        c_new = f_g * c_prev + i_g * g_g
        h_new = o_g * jnp.tanh(c_new)
        return h_new, c_new

    # -------------- step 0: embedding DMA gather + LSTM (runs once) ------------
    @pl.when(j == 0)
    def _prologue():
        vocab = emb_hbm.shape[0]
        # DMA-gather only the B required rows out of HBM; clamp ids so a bad
        # token can never issue an out-of-bounds DMA.
        copies = []
        for bb in range(B):
            tok = jnp.clip(tokens_ref[bb], 0, vocab - 1)
            cp = pltpu.make_async_copy(emb_hbm.at[pl.ds(tok, 1)],
                                       xg_scr.at[pl.ds(bb, 1)],
                                       gather_sem.at[bb])
            cp.start()
            copies.append(cp)

        # Init the online-logsumexp state while the gathers are in flight.
        m_scr[...] = jnp.full(m_scr.shape, -jnp.inf, m_scr.dtype)
        l_scr[...] = jnp.zeros(l_scr.shape, l_scr.dtype)

        wdt = w_ref.dtype
        # Layer 0: overlap the gather latency with the h-side half of the
        # fused matmul (gates = x @ w_x + h_prev @ w_h + b).
        h_prev = h0_ref[0]
        c_prev = c0_ref[0]
        gates_h = jnp.dot(h_prev.astype(wdt), w_ref[0, H:2 * H, :],
                          preferred_element_type=jnp.float32)
        for cp in copies:               # wait on the exact started descriptors
            cp.wait()
        x = xg_scr[...]                 # (B, H) f32
        gates = (gates_h
                 + jnp.dot(x.astype(wdt), w_ref[0, 0:H, :],
                           preferred_element_type=jnp.float32)
                 + b_ref[0])
        h_new, c_new = lstm_cell(gates, c_prev)
        h_out_ref[0] = h_new
        c_out_ref[0] = c_new
        x = h_new

        # Remaining layers, single timestep each.
        for l in range(1, num_layers):
            h_prev = h0_ref[l]
            c_prev = c0_ref[l]
            gates = (jnp.dot(x.astype(wdt), w_ref[l, 0:H, :],
                             preferred_element_type=jnp.float32)
                     + jnp.dot(h_prev.astype(wdt), w_ref[l, H:2 * H, :],
                               preferred_element_type=jnp.float32)
                     + b_ref[l])
            h_new, c_new = lstm_cell(gates, c_prev)
            h_out_ref[l] = h_new
            c_out_ref[l] = c_new
            x = h_new
            # TODO(synk): nn.LSTM inter-layer dropout is training-mode only;
            # this kernel reproduces eval/inference semantics (no dropout).

        # Cache the top hidden state once in the matmul dtype (bf16).
        x_scr[...] = x.astype(x_scr.dtype)

    # -------- every step: one streamed vocab tile of the output projection -----
    col = pl.multiple_of(j * tv, 128)
    x_top = x_scr[...]                                          # (B, H) bf16
    logits = (jnp.dot(x_top, w_out_ref[...],
                      preferred_element_type=jnp.float32)
              + b_out_ref[:, pl.ds(col, tv)])
    # Raw logits go straight into the resident output block (lane-dense store);
    # they are normalized in place on the last step.
    logp_ref[:, pl.ds(col, tv)] = logits
    m_prev = m_scr[...]
    m_new = jnp.maximum(m_prev, jnp.max(logits, axis=-1, keepdims=True))
    l_scr[...] = (l_scr[...] * jnp.exp(m_prev - m_new)
                  + jnp.sum(jnp.exp(logits - m_new), axis=-1, keepdims=True))
    m_scr[...] = m_new

    # ------- last step: finalize log_softmax with one vectorized subtract ------
    @pl.when(j == pl.num_programs(0) - 1)
    def _finalize():
        lse = m_scr[...] + jnp.log(l_scr[...])                  # (B, 1)
        logp_ref[...] = logp_ref[...] - lse


def prepare_decoder_params(emb, w_ih, w_hh, b_ih, b_hh, w_out, b_out,
                           weight_dtype=jnp.bfloat16, tv=4096):
    """Pack PyTorch-layout Decoder parameters for the kernel (done once).

    PyTorch layouts:
      emb (V, H), w_ih/w_hh (L, 4H, H), b_ih/b_hh (L, 4H), w_out (V, H), b_out (V,)
    """
    L, fourH, H = w_ih.shape
    V = w_out.shape[0]

    # Effective vocab tile: largest multiple of 128 that divides V and is <= tv.
    tv = min(tv, V)
    if tv % 128 != 0 or V % tv != 0:
        cand = (tv // 128) * 128
        while cand >= 128 and V % cand != 0:
            cand -= 128
        tv = cand if cand >= 128 else V
    n_tiles = V // tv

    # Fused, transposed LSTM weight: rows 0:H are w_ih^T, rows H:2H are w_hh^T.
    w = jnp.concatenate([jnp.swapaxes(w_ih, 1, 2),
                         jnp.swapaxes(w_hh, 1, 2)], axis=1).astype(weight_dtype)
    b = (b_ih + b_hh).reshape(L, 1, fourH).astype(jnp.float32)

    # Pre-tiled, lane-dense output projection: tile j is one contiguous burst.
    w_out_t = jnp.swapaxes(w_out, 0, 1)                          # (H, V)
    w_out_tiles = jnp.transpose(
        w_out_t.reshape(H, n_tiles, tv), (1, 0, 2)).astype(weight_dtype)

    return {
        # emb stays f32: it lives in HBM and only B rows are DMAed per step.
        "emb": emb.astype(jnp.float32),
        "w": w,
        "b": b,
        "w_out": w_out_tiles,                                    # (n_tiles, H, tv)
        "b_out": b_out.reshape(1, -1).astype(jnp.float32),       # (1, V) resident
        "tv": tv,
    }


def decoder_forward(tokens, hidden, params):
    """Pallas equivalent of Decoder.forward(input_token, hidden) (eval mode).

    tokens: (B, 1) int32; hidden = (h0, c0), each (L, B, H) float32.
    Returns (log_probs (B, 1, V), (h_n, c_n)).
    """
    h0, c0 = hidden
    L, B, H = h0.shape
    emb, w, b = params["emb"], params["w"], params["b"]
    w_out, b_out, tv = params["w_out"], params["b_out"], params["tv"]
    n_tiles = w_out.shape[0]
    V = n_tiles * tv

    tokens_flat = tokens.reshape(B).astype(jnp.int32)   # (B,): avoid 2D SMEM padding

    kernel = functools.partial(_decoder_kernel,
                               num_layers=L, hidden_size=H, tv=tv)
    whole3 = lambda j: (0, 0, 0)

    # Scoped-VMEM budget from the actual footprint (+50% headroom), capped
    # below the physical per-core VMEM of the running chip (v7x = 64 MiB).
    est = (4 * L * B * H * 4                                      # h0/c0 + h_n/c_n
           + w.size * w.dtype.itemsize + b.size * 4               # LSTM params
           + 2 * H * tv * w_out.dtype.itemsize                    # double-buffered proj tile
           + V * 4                                                # resident b_out
           + B * V * 4                                            # resident logp output
           + B * H * (2 + 4)                                      # x_scr (bf16) + xg_scr (f32)
           + 2 * 8 * 128 * 4)                                     # padded m/l scratch
    try:
        vmem_cap = int(getattr(pltpu.get_tpu_info(), "vmem_capacity_bytes",
                               64 * 2**20))
    except Exception:
        vmem_cap = 64 * 2**20
    vmem_limit = int(min(vmem_cap - 4 * 2**20,
                         max(8 * 2**20, int(1.5 * est))))

    logp, h_n, c_n = pl.pallas_call(
        kernel,
        grid=(n_tiles,),
        in_specs=[
            pl.BlockSpec(memory_space=pltpu.MemorySpace.SMEM),    # tokens (B,)
            pl.BlockSpec(memory_space=pl.ANY),                    # emb stays in HBM
            pl.BlockSpec((L, B, H), whole3),                      # h0 (resident)
            pl.BlockSpec((L, B, H), whole3),                      # c0 (resident)
            pl.BlockSpec((L, 2 * H, 4 * H), whole3),              # fused LSTM weights
            pl.BlockSpec((L, 1, 4 * H), whole3),                  # fused LSTM bias
            pl.BlockSpec((None, H, tv), lambda j: (j, 0, 0)),     # w_out tile (streamed)
            pl.BlockSpec((1, V), lambda j: (0, 0)),               # b_out (resident)
        ],
        out_specs=(
            pl.BlockSpec((B, V), lambda j: (0, 0)),               # logp (resident)
            pl.BlockSpec((L, B, H), whole3),                      # h_n
            pl.BlockSpec((L, B, H), whole3),                      # c_n
        ),
        out_shape=(
            jax.ShapeDtypeStruct((B, V), jnp.float32),
            jax.ShapeDtypeStruct((L, B, H), h0.dtype),
            jax.ShapeDtypeStruct((L, B, H), c0.dtype),
        ),
        scratch_shapes=[
            pltpu.VMEM((B, H), w_out.dtype),                      # x_scr (top hidden, bf16)
            pltpu.VMEM((B, H), emb.dtype),                        # xg_scr (gathered rows)
            pltpu.VMEM((B, 1), jnp.float32),                      # m_scr (running max)
            pltpu.VMEM((B, 1), jnp.float32),                      # l_scr (running sumexp)
            pltpu.SemaphoreType.DMA((B,)),                        # gather semaphores
        ],
        # h0 -> h_n, c0 -> c_n updated in place (no extra HBM buffers).
        input_output_aliases={2: 1, 3: 2},
        compiler_params=pltpu.CompilerParams(
            dimension_semantics=("arbitrary",),
            vmem_limit_bytes=vmem_limit),
    )(tokens_flat, emb, h0, c0, w, b, w_out, b_out)

    # PyTorch returns output (B, 1, V) and hidden (h, c) each (L, B, H).
    return logp.reshape(B, 1, V), (h_n, c_n)


def decoder_reference(tokens, hidden, params):
    """Pure-JAX reference mirroring the kernel numerics (bf16 weights, f32 accum)."""
    h0, c0 = hidden
    L, B, H = h0.shape
    emb, w, b = params["emb"], params["w"], params["b"]
    w_out_tiles, b_out = params["w_out"], params["b_out"]
    n_tiles, _, tv = w_out_tiles.shape
    w_out = jnp.transpose(w_out_tiles, (1, 0, 2)).reshape(H, n_tiles * tv)

    x = emb[tokens.reshape(-1)].astype(jnp.float32)               # (B, H)
    hs, cs = [], []
    for l in range(L):
        xh = jnp.concatenate([x, h0[l]], axis=-1).astype(w.dtype)
        gates = jnp.dot(xh, w[l], preferred_element_type=jnp.float32) + b[l]
        i = jax.nn.sigmoid(gates[:, :H])
        f = jax.nn.sigmoid(gates[:, H:2 * H])
        g = jnp.tanh(gates[:, 2 * H:3 * H])
        o = jax.nn.sigmoid(gates[:, 3 * H:4 * H])
        c = f * c0[l] + i * g
        h = o * jnp.tanh(c)
        hs.append(h)
        cs.append(c)
        x = h
    logits = jnp.dot(x.astype(w_out.dtype), w_out,
                     preferred_element_type=jnp.float32) + b_out
    logp = jax.nn.log_softmax(logits, axis=-1)
    return logp.reshape(B, 1, -1), (jnp.stack(hs), jnp.stack(cs))


if __name__ == "__main__":
    # Small config consistent with the module.  H is a multiple of 128 so the
    # gate slices are lane-aligned, B = 8 fills the sublanes, and V = 512 with
    # tv = 256 exercises >1 streamed vocab tile.
    V, H, L, B = 512, 128, 2, 8

    key = jax.random.PRNGKey(0)
    ks = jax.random.split(key, 10)

    def u(k, shape):  # matches nn.init.uniform_(param, -0.08, 0.08)
        return jax.random.uniform(k, shape, jnp.float32, minval=-0.08, maxval=0.08)

    # PyTorch-layout parameters.
    emb = u(ks[0], (V, H))
    w_ih = u(ks[1], (L, 4 * H, H))
    w_hh = u(ks[2], (L, 4 * H, H))
    b_ih = u(ks[3], (L, 4 * H))
    b_hh = u(ks[4], (L, 4 * H))
    w_out = u(ks[5], (V, H))
    b_out = u(ks[6], (V,))

    tokens = jax.random.randint(ks[7], (B, 1), 0, V, dtype=jnp.int32)
    h0 = u(ks[8], (L, B, H))
    c0 = u(ks[9], (L, B, H))

    params = prepare_decoder_params(emb, w_ih, w_hh, b_ih, b_hh, w_out, b_out,
                                    tv=256)

    logp_ref, (h_ref, c_ref) = decoder_reference(tokens, (h0, c0), params)

    logp, (h_n, c_n) = decoder_forward(tokens, (h0, c0), params)
    jax.block_until_ready((logp, h_n, c_n))

    assert logp.shape == (B, 1, V)
    assert h_n.shape == (L, B, H) and c_n.shape == (L, B, H)
    # bf16 weight storage (f32 accumulation) -> tolerance loosened from 1e-5.
    assert jnp.allclose(logp, logp_ref, atol=2e-3, rtol=2e-3)
    assert jnp.allclose(h_n, h_ref, atol=2e-3, rtol=2e-3)
    assert jnp.allclose(c_n, c_ref, atol=2e-3, rtol=2e-3)

    print("KERNEL_OK")
</pallas_src>

<mosaic_0001>
module attributes {stable_mosaic.version = 11 : i64} {
  func.func @_decoder_kernel(%arg0: i32, %arg1: memref<8xi32, #tpu.memory_space<smem>>, %arg2: memref<512x128xf32, #tpu.memory_space<any>>, %arg3: memref<2x8x128xf32, #tpu.memory_space<vmem>>, %arg4: memref<2x8x128xf32, #tpu.memory_space<vmem>>, %arg5: memref<2x256x512xbf16, #tpu.memory_space<vmem>>, %arg6: memref<2x1x512xf32, #tpu.memory_space<vmem>>, %arg7: memref<1x128x256xbf16, #tpu.memory_space<vmem>>, %arg8: memref<1x512xf32, #tpu.memory_space<vmem>>, %arg9: memref<8x512xf32, #tpu.memory_space<vmem>>, %arg10: memref<2x8x128xf32, #tpu.memory_space<vmem>>, %arg11: memref<2x8x128xf32, #tpu.memory_space<vmem>>, %arg12: memref<8x128xbf16, #tpu.memory_space<vmem>>, %arg13: memref<8x128xf32, #tpu.memory_space<vmem>>, %arg14: memref<8x1xf32, #tpu.memory_space<vmem>>, %arg15: memref<8x1xf32, #tpu.memory_space<vmem>>, %arg16: memref<8x!tpu.dma_semaphore, #tpu.memory_space<semaphore_mem>>) attributes {dimension_semantics = [#tpu.dimension_semantics<arbitrary>], iteration_bounds = array<i64: 2>, scalar_prefetch = 0 : i64, scratch_operands = 5 : i64, tpu.core_type = #tpu.core_type<tc>, window_params = [{transform_indices = @transform_0, window_bounds = array<i64: 8>}, {}, {pipeline_mode = #tpu.pipeline_mode<synchronous>, transform_indices = @transform_2, window_bounds = array<i64: 2, 8, 128>}, {pipeline_mode = #tpu.pipeline_mode<synchronous>, transform_indices = @transform_3, window_bounds = array<i64: 2, 8, 128>}, {pipeline_mode = #tpu.pipeline_mode<synchronous>, transform_indices = @transform_4, window_bounds = array<i64: 2, 256, 512>}, {pipeline_mode = #tpu.pipeline_mode<synchronous>, transform_indices = @transform_5, window_bounds = array<i64: 2, 1, 512>}, {transform_indices = @transform_6, window_bounds = array<i64: 1, 128, 256>}, {pipeline_mode = #tpu.pipeline_mode<synchronous>, transform_indices = @transform_7, window_bounds = array<i64: 1, 512>}, {pipeline_mode = #tpu.pipeline_mode<synchronous>, transform_indices = @transform_8, window_bounds = array<i64: 8, 512>}, {pipeline_mode = #tpu.pipeline_mode<synchronous>, transform_indices = @transform_9, window_bounds = array<i64: 2, 8, 128>}, {pipeline_mode = #tpu.pipeline_mode<synchronous>, transform_indices = @transform_10, window_bounds = array<i64: 2, 8, 128>}]} {
    %c0_i32 = arith.constant 0 : i32
    %0 = arith.cmpi eq, %arg0, %c0_i32 : i32
    %1 = arith.extui %0 : i1 to i32
    %c0_i32_0 = arith.constant 0 : i32
    %2 = arith.cmpi ne, %1, %c0_i32_0 : i32
    scf.if %2 {
      %c0_18 = arith.constant 0 : index
      %34 = memref.load %arg1[%c0_18] : memref<8xi32, #tpu.memory_space<smem>>
      %c0_i32_19 = arith.constant 0 : i32
      %c511_i32 = arith.constant 511 : i32
      %35 = arith.maxsi %c0_i32_19, %34 : i32
      %36 = arith.minsi %c511_i32, %35 : i32
      %c0_i32_20 = arith.constant 0 : i32
      %c0_i32_21 = arith.constant 0 : i32
      %37 = tpu.memref_slice %arg2[%36, %c0_i32_21] : memref<512x128xf32, #tpu.memory_space<any>> -> memref<1x128xf32, #tpu.memory_space<any>>
      %c0_i32_22 = arith.constant 0 : i32
      %c0_i32_23 = arith.constant 0 : i32
      %38 = tpu.memref_slice %arg13[%c0_i32_22, %c0_i32_23] : memref<8x128xf32, #tpu.memory_space<vmem>> -> memref<1x128xf32, #tpu.memory_space<vmem>>
      %39 = tpu.memref_slice %arg16[%c0_i32_20] : memref<8x!tpu.dma_semaphore, #tpu.memory_space<semaphore_mem>> -> memref<1x!tpu.dma_semaphore, #tpu.memory_space<semaphore_mem>>
      %40 = tpu.memref_squeeze %39 : memref<1x!tpu.dma_semaphore, #tpu.memory_space<semaphore_mem>> -> memref<!tpu.dma_semaphore, #tpu.memory_space<semaphore_mem>>
      tpu.enqueue_dma source(%37 : memref<1x128xf32, #tpu.memory_space<any>>) target(%38 : memref<1x128xf32, #tpu.memory_space<vmem>>) target_semaphore(%40 : memref<!tpu.dma_semaphore, #tpu.memory_space<semaphore_mem>>)
      %c1 = arith.constant 1 : index
      %41 = memref.load %arg1[%c1] : memref<8xi32, #tpu.memory_space<smem>>
      %c0_i32_24 = arith.constant 0 : i32
      %c511_i32_25 = arith.constant 511 : i32
      %42 = arith.maxsi %c0_i32_24, %41 : i32
      %43 = arith.minsi %c511_i32_25, %42 : i32
      %c1_i32_26 = arith.constant 1 : i32
      %c0_i32_27 = arith.constant 0 : i32
      %44 = tpu.memref_slice %arg2[%43, %c0_i32_27] : memref<512x128xf32, #tpu.memory_space<any>> -> memref<1x128xf32, #tpu.memory_space<any>>
      %c1_i32_28 = arith.constant 1 : i32
      %c0_i32_29 = arith.constant 0 : i32
      %45 = tpu.memref_slice %arg13[%c1_i32_28, %c0_i32_29] : memref<8x128xf32, #tpu.memory_space<vmem>> -> memref<1x128xf32, #tpu.memory_space<vmem>>
      %46 = tpu.memref_slice %arg16[%c1_i32_26] : memref<8x!tpu.dma_semaphore, #tpu.memory_space<semaphore_mem>> -> memref<1x!tpu.dma_semaphore, #tpu.memory_space<semaphore_mem>>
      %47 = tpu.memref_squeeze %46 : memref<1x!tpu.dma_semaphore, #tpu.memory_space<semaphore_mem>> -> memref<!tpu.dma_semaphore, #tpu.memory_space<semaphore_mem>>
      tpu.enqueue_dma source(%44 : memref<1x128xf32, #tpu.memory_space<any>>) target(%45 : memref<1x128xf32, #tpu.memory_space<vmem>>) target_semaphore(%47 : memref<!tpu.dma_semaphore, #tpu.memory_space<semaphore_mem>>)
      %c2 = arith.constant 2 : index
      %48 = memref.load %arg1[%c2] : memref<8xi32, #tpu.memory_space<smem>>
      %c0_i32_30 = arith.constant 0 : i32
      %c511_i32_31 = arith.constant 511 : i32
      %49 = arith.maxsi %c0_i32_30, %48 : i32
      %50 = arith.minsi %c511_i32_31, %49 : i32
      %c2_i32 = arith.constant 2 : i32
      %c0_i32_32 = arith.constant 0 : i32
      %51 = tpu.memref_slice %arg2[%50, %c0_i32_32] : memref<512x128xf32, #tpu.memory_space<any>> -> memref<1x128xf32, #tpu.memory_space<any>>
      %c2_i32_33 = arith.constant 2 : i32
      %c0_i32_34 = arith.constant 0 : i32
      %52 = tpu.memref_slice %arg13[%c2_i32_33, %c0_i32_34] : memref<8x128xf32, #tpu.memory_space<vmem>> -> memref<1x128xf32, #tpu.memory_space<vmem>>
      %53 = tpu.memref_slice %arg16[%c2_i32] : memref<8x!tpu.dma_semaphore, #tpu.memory_space<semaphore_mem>> -> memref<1x!tpu.dma_semaphore, #tpu.memory_space<semaphore_mem>>
      %54 = tpu.memref_squeeze %53 : memref<1x!tpu.dma_semaphore, #tpu.memory_space<semaphore_mem>> -> memref<!tpu.dma_semaphore, #tpu.memory_space<semaphore_mem>>
      tpu.enqueue_dma source(%51 : memref<1x128xf32, #tpu.memory_space<any>>) target(%52 : memref<1x128xf32, #tpu.memory_space<vmem>>) target_semaphore(%54 : memref<!tpu.dma_semaphore, #tpu.memory_space<semaphore_mem>>)
      %c3 = arith.constant 3 : index
      %55 = memref.load %arg1[%c3] : memref<8xi32, #tpu.memory_space<smem>>
      %c0_i32_35 = arith.constant 0 : i32
      %c511_i32_36 = arith.constant 511 : i32
      %56 = arith.maxsi %c0_i32_35, %55 : i32
      %57 = arith.minsi %c511_i32_36, %56 : i32
      %c3_i32 = arith.constant 3 : i32
      %c0_i32_37 = arith.constant 0 : i32
      %58 = tpu.memref_slice %arg2[%57, %c0_i32_37] : memref<512x128xf32, #tpu.memory_space<any>> -> memref<1x128xf32, #tpu.memory_space<any>>
      %c3_i32_38 = arith.constant 3 : i32
      %c0_i32_39 = arith.constant 0 : i32
      %59 = tpu.memref_slice %arg13[%c3_i32_38, %c0_i32_39] : memref<8x128xf32, #tpu.memory_space<vmem>> -> memref<1x128xf32, #tpu.memory_space<vmem>>
      %60 = tpu.memref_slice %arg16[%c3_i32] : memref<8x!tpu.dma_semaphore, #tpu.memory_space<semaphore_mem>> -> memref<1x!tpu.dma_semaphore, #tpu.memory_space<semaphore_mem>>
      %61 = tpu.memref_squeeze %60 : memref<1x!tpu.dma_semaphore, #tpu.memory_space<semaphore_mem>> -> memref<!tpu.dma_semaphore, #tpu.memory_space<semaphore_mem>>
      tpu.enqueue_dma source(%58 : memref<1x128xf32, #tpu.memory_space<any>>) target(%59 : memref<1x128xf32, #tpu.memory_space<vmem>>) target_semaphore(%61 : memref<!tpu.dma_semaphore, #tpu.memory_space<semaphore_mem>>)
      %c4 = arith.constant 4 : index
      %62 = memref.load %arg1[%c4] : memref<8xi32, #tpu.memory_space<smem>>
      %c0_i32_40 = arith.constant 0 : i32
      %c511_i32_41 = arith.constant 511 : i32
      %63 = arith.maxsi %c0_i32_40, %62 : i32
      %64 = arith.minsi %c511_i32_41, %63 : i32
      %c4_i32 = arith.constant 4 : i32
      %c0_i32_42 = arith.constant 0 : i32
      %65 = tpu.memref_slice %arg2[%64, %c0_i32_42] : memref<512x128xf32, #tpu.memory_space<any>> -> memref<1x128xf32, #tpu.memory_space<any>>
      %c4_i32_43 = arith.constant 4 : i32
      %c0_i32_44 = arith.constant 0 : i32
      %66 = tpu.memref_slice %arg13[%c4_i32_43, %c0_i32_44] : memref<8x128xf32, #tpu.memory_space<vmem>> -> memref<1x128xf32, #tpu.memory_space<vmem>>
      %67 = tpu.memref_slice %arg16[%c4_i32] : memref<8x!tpu.dma_semaphore, #tpu.memory_space<semaphore_mem>> -> memref<1x!tpu.dma_semaphore, #tpu.memory_space<semaphore_mem>>
      %68 = tpu.memref_squeeze %67 : memref<1x!tpu.dma_semaphore, #tpu.memory_space<semaphore_mem>> -> memref<!tpu.dma_semaphore, #tpu.memory_space<semaphore_mem>>
      tpu.enqueue_dma source(%65 : memref<1x128xf32, #tpu.memory_space<any>>) target(%66 : memref<1x128xf32, #tpu.memory_space<vmem>>) target_semaphore(%68 : memref<!tpu.dma_semaphore, #tpu.memory_space<semaphore_mem>>)
      %c5 = arith.constant 5 : index
      %69 = memref.load %arg1[%c5] : memref<8xi32, #tpu.memory_space<smem>>
      %c0_i32_45 = arith.constant 0 : i32
      %c511_i32_46 = arith.constant 511 : i32
      %70 = arith.maxsi %c0_i32_45, %69 : i32
      %71 = arith.minsi %c511_i32_46, %70 : i32
      %c5_i32 = arith.constant 5 : i32
      %c0_i32_47 = arith.constant 0 : i32
      %72 = tpu.memref_slice %arg2[%71, %c0_i32_47] : memref<512x128xf32, #tpu.memory_space<any>> -> memref<1x128xf32, #tpu.memory_space<any>>
      %c5_i32_48 = arith.constant 5 : i32
      %c0_i32_49 = arith.constant 0 : i32
      %73 = tpu.memref_slice %arg13[%c5_i32_48, %c0_i32_49] : memref<8x128xf32, #tpu.memory_space<vmem>> -> memref<1x128xf32, #tpu.memory_space<vmem>>
      %74 = tpu.memref_slice %arg16[%c5_i32] : memref<8x!tpu.dma_semaphore, #tpu.memory_space<semaphore_mem>> -> memref<1x!tpu.dma_semaphore, #tpu.memory_space<semaphore_mem>>
      %75 = tpu.memref_squeeze %74 : memref<1x!tpu.dma_semaphore, #tpu.memory_space<semaphore_mem>> -> memref<!tpu.dma_semaphore, #tpu.memory_space<semaphore_mem>>
      tpu.enqueue_dma source(%72 : memref<1x128xf32, #tpu.memory_space<any>>) target(%73 : memref<1x128xf32, #tpu.memory_space<vmem>>) target_semaphore(%75 : memref<!tpu.dma_semaphore, #tpu.memory_space<semaphore_mem>>)
      %c6 = arith.constant 6 : index
      %76 = memref.load %arg1[%c6] : memref<8xi32, #tpu.memory_space<smem>>
      %c0_i32_50 = arith.constant 0 : i32
      %c511_i32_51 = arith.constant 511 : i32
      %77 = arith.maxsi %c0_i32_50, %76 : i32
      %78 = arith.minsi %c511_i32_51, %77 : i32
      %c6_i32 = arith.constant 6 : i32
      %c0_i32_52 = arith.constant 0 : i32
      %79 = tpu.memref_slice %arg2[%78, %c0_i32_52] : memref<512x128xf32, #tpu.memory_space<any>> -> memref<1x128xf32, #tpu.memory_space<any>>
      %c6_i32_53 = arith.constant 6 : i32
      %c0_i32_54 = arith.constant 0 : i32
      %80 = tpu.memref_slice %arg13[%c6_i32_53, %c0_i32_54] : memref<8x128xf32, #tpu.memory_space<vmem>> -> memref<1x128xf32, #tpu.memory_space<vmem>>
      %81 = tpu.memref_slice %arg16[%c6_i32] : memref<8x!tpu.dma_semaphore, #tpu.memory_space<semaphore_mem>> -> memref<1x!tpu.dma_semaphore, #tpu.memory_space<semaphore_mem>>
      %82 = tpu.memref_squeeze %81 : memref<1x!tpu.dma_semaphore, #tpu.memory_space<semaphore_mem>> -> memref<!tpu.dma_semaphore, #tpu.memory_space<semaphore_mem>>
      tpu.enqueue_dma source(%79 : memref<1x128xf32, #tpu.memory_space<any>>) target(%80 : memref<1x128xf32, #tpu.memory_space<vmem>>) target_semaphore(%82 : memref<!tpu.dma_semaphore, #tpu.memory_space<semaphore_mem>>)
      %c7 = arith.constant 7 : index
      %83 = memref.load %arg1[%c7] : memref<8xi32, #tpu.memory_space<smem>>
      %c0_i32_55 = arith.constant 0 : i32
      %c511_i32_56 = arith.constant 511 : i32
      %84 = arith.maxsi %c0_i32_55, %83 : i32
      %85 = arith.minsi %c511_i32_56, %84 : i32
      %c7_i32 = arith.constant 7 : i32
      %c0_i32_57 = arith.constant 0 : i32
      %86 = tpu.memref_slice %arg2[%85, %c0_i32_57] : memref<512x128xf32, #tpu.memory_space<any>> -> memref<1x128xf32, #tpu.memory_space<any>>
      %c7_i32_58 = arith.constant 7 : i32
      %c0_i32_59 = arith.constant 0 : i32
      %87 = tpu.memref_slice %arg13[%c7_i32_58, %c0_i32_59] : memref<8x128xf32, #tpu.memory_space<vmem>> -> memref<1x128xf32, #tpu.memory_space<vmem>>
      %88 = tpu.memref_slice %arg16[%c7_i32] : memref<8x!tpu.dma_semaphore, #tpu.memory_space<semaphore_mem>> -> memref<1x!tpu.dma_semaphore, #tpu.memory_space<semaphore_mem>>
      %89 = tpu.memref_squeeze %88 : memref<1x!tpu.dma_semaphore, #tpu.memory_space<semaphore_mem>> -> memref<!tpu.dma_semaphore, #tpu.memory_space<semaphore_mem>>
      tpu.enqueue_dma source(%86 : memref<1x128xf32, #tpu.memory_space<any>>) target(%87 : memref<1x128xf32, #tpu.memory_space<vmem>>) target_semaphore(%89 : memref<!tpu.dma_semaphore, #tpu.memory_space<semaphore_mem>>)
      %cst_60 = arith.constant 0xFF800000 : f32
      %90 = vector.broadcast %cst_60 : f32 to vector<8x1xf32>
      %c0_61 = arith.constant 0 : index
      %c0_62 = arith.constant 0 : index
      %91 = vector.load %arg14[%c0_61, %c0_62] : memref<8x1xf32, #tpu.memory_space<vmem>>, vector<8x1xf32>
      tpu.vector_store %arg14[%c0_61, %c0_62], %90 {strides = array<i32>} : memref<8x1xf32, #tpu.memory_space<vmem>>, vector<8x1xf32>,
      %cst_63 = arith.constant 0.000000e+00 : f32
      %92 = vector.broadcast %cst_63 : f32 to vector<8x1xf32>
      %c0_64 = arith.constant 0 : index
      %c0_65 = arith.constant 0 : index
      %93 = vector.load %arg15[%c0_64, %c0_65] : memref<8x1xf32, #tpu.memory_space<vmem>>, vector<8x1xf32>
      tpu.vector_store %arg15[%c0_64, %c0_65], %92 {strides = array<i32>} : memref<8x1xf32, #tpu.memory_space<vmem>>, vector<8x1xf32>,
      %c0_66 = arith.constant 0 : index
      %c0_67 = arith.constant 0 : index
      %c0_68 = arith.constant 0 : index
      %94 = vector.load %arg3[%c0_66, %c0_67, %c0_68] : memref<2x8x128xf32, #tpu.memory_space<vmem>>, vector<1x8x128xf32>
      %95 = vector.shape_cast %94 : vector<1x8x128xf32> to vector<8x128xf32>
      %c0_69 = arith.constant 0 : index
      %c0_70 = arith.constant 0 : index
      %c0_71 = arith.constant 0 : index
      %96 = vector.load %arg4[%c0_69, %c0_70, %c0_71] : memref<2x8x128xf32, #tpu.memory_space<vmem>>, vector<1x8x128xf32>
      %97 = vector.shape_cast %96 : vector<1x8x128xf32> to vector<8x128xf32>
      %98 = arith.truncf %95 : vector<8x128xf32> to vector<8x128xbf16>
      %c0_72 = arith.constant 0 : index
      %c128 = arith.constant 128 : index
      %c0_73 = arith.constant 0 : index
      %99 = vector.load %arg5[%c0_72, %c128, %c0_73] : memref<2x256x512xbf16, #tpu.memory_space<vmem>>, vector<1x128x512xbf16>
      %100 = vector.shape_cast %99 : vector<1x128x512xbf16> to vector<128x512xbf16>
      %cst_74 = arith.constant dense<0.000000e+00> : vector<8x512xf32>
      %101 = tpu.matmul %98, %100, %cst_74 {dimension_numbers = #tpu.dot_dimension_numbers<[1], [0], [0], [1], [0, 0, 1, 1], [], []>} : vector<8x128xbf16>, vector<128x512xbf16>, vector<8x512xf32> -> vector<8x512xf32>
      %c0_i32_75 = arith.constant 0 : i32
      %c0_i32_76 = arith.constant 0 : i32
      %102 = tpu.memref_slice %arg2[%36, %c0_i32_76] : memref<512x128xf32, #tpu.memory_space<any>> -> memref<1x128xf32, #tpu.memory_space<any>>
      %c0_i32_77 = arith.constant 0 : i32
      %c0_i32_78 = arith.constant 0 : i32
      %103 = tpu.memref_slice %arg13[%c0_i32_77, %c0_i32_78] : memref<8x128xf32, #tpu.memory_space<vmem>> -> memref<1x128xf32, #tpu.memory_space<vmem>>
      %104 = tpu.memref_slice %arg16[%c0_i32_75] : memref<8x!tpu.dma_semaphore, #tpu.memory_space<semaphore_mem>> -> memref<1x!tpu.dma_semaphore, #tpu.memory_space<semaphore_mem>>
      %105 = tpu.memref_squeeze %104 : memref<1x!tpu.dma_semaphore, #tpu.memory_space<semaphore_mem>> -> memref<!tpu.dma_semaphore, #tpu.memory_space<semaphore_mem>>
      tpu.wait_dma2 semaphore(%105 : memref<!tpu.dma_semaphore, #tpu.memory_space<semaphore_mem>>) src(%102 : memref<1x128xf32, #tpu.memory_space<any>>) dst(%103 : memref<1x128xf32, #tpu.memory_space<vmem>>)
      %c1_i32_79 = arith.constant 1 : i32
      %c0_i32_80 = arith.constant 0 : i32
      %106 = tpu.memref_slice %arg2[%43, %c0_i32_80] : memref<512x128xf32, #tpu.memory_space<any>> -> memref<1x128xf32, #tpu.memory_space<any>>
      %c1_i32_81 = arith.constant 1 : i32
      %c0_i32_82 = arith.constant 0 : i32
      %107 = tpu.memref_slice %arg13[%c1_i32_81, %c0_i32_82] : memref<8x128xf32, #tpu.memory_space<vmem>> -> memref<1x128xf32, #tpu.memory_space<vmem>>
      %108 = tpu.memref_slice %arg16[%c1_i32_79] : memref<8x!tpu.dma_semaphore, #tpu.memory_space<semaphore_mem>> -> memref<1x!tpu.dma_semaphore, #tpu.memory_space<semaphore_mem>>
      %109 = tpu.memref_squeeze %108 : memref<1x!tpu.dma_semaphore, #tpu.memory_space<semaphore_mem>> -> memref<!tpu.dma_semaphore, #tpu.memory_space<semaphore_mem>>
      tpu.wait_dma2 semaphore(%109 : memref<!tpu.dma_semaphore, #tpu.memory_space<semaphore_mem>>) src(%106 : memref<1x128xf32, #tpu.memory_space<any>>) dst(%107 : memref<1x128xf32, #tpu.memory_space<vmem>>)
      %c2_i32_83 = arith.constant 2 : i32
      %c0_i32_84 = arith.constant 0 : i32
      %110 = tpu.memref_slice %arg2[%50, %c0_i32_84] : memref<512x128xf32, #tpu.memory_space<any>> -> memref<1x128xf32, #tpu.memory_space<any>>
      %c2_i32_85 = arith.constant 2 : i32
      %c0_i32_86 = arith.constant 0 : i32
      %111 = tpu.memref_slice %arg13[%c2_i32_85, %c0_i32_86] : memref<8x128xf32, #tpu.memory_space<vmem>> -> memref<1x128xf32, #tpu.memory_space<vmem>>
      %112 = tpu.memref_slice %arg16[%c2_i32_83] : memref<8x!tpu.dma_semaphore, #tpu.memory_space<semaphore_mem>> -> memref<1x!tpu.dma_semaphore, #tpu.memory_space<semaphore_mem>>
      %113 = tpu.memref_squeeze %112 : memref<1x!tpu.dma_semaphore, #tpu.memory_space<semaphore_mem>> -> memref<!tpu.dma_semaphore, #tpu.memory_space<semaphore_mem>>
      tpu.wait_dma2 semaphore(%113 : memref<!tpu.dma_semaphore, #tpu.memory_space<semaphore_mem>>) src(%110 : memref<1x128xf32, #tpu.memory_space<any>>) dst(%111 : memref<1x128xf32, #tpu.memory_space<vmem>>)
      %c3_i32_87 = arith.constant 3 : i32
      %c0_i32_88 = arith.constant 0 : i32
      %114 = tpu.memref_slice %arg2[%57, %c0_i32_88] : memref<512x128xf32, #tpu.memory_space<any>> -> memref<1x128xf32, #tpu.memory_space<any>>
      %c3_i32_89 = arith.constant 3 : i32
      %c0_i32_90 = arith.constant 0 : i32
      %115 = tpu.memref_slice %arg13[%c3_i32_89, %c0_i32_90] : memref<8x128xf32, #tpu.memory_space<vmem>> -> memref<1x128xf32, #tpu.memory_space<vmem>>
      %116 = tpu.memref_slice %arg16[%c3_i32_87] : memref<8x!tpu.dma_semaphore, #tpu.memory_space<semaphore_mem>> -> memref<1x!tpu.dma_semaphore, #tpu.memory_space<semaphore_mem>>
      %117 = tpu.memref_squeeze %116 : memref<1x!tpu.dma_semaphore, #tpu.memory_space<semaphore_mem>> -> memref<!tpu.dma_semaphore, #tpu.memory_space<semaphore_mem>>
      tpu.wait_dma2 semaphore(%117 : memref<!tpu.dma_semaphore, #tpu.memory_space<semaphore_mem>>) src(%114 : memref<1x128xf32, #tpu.memory_space<any>>) dst(%115 : memref<1x128xf32, #tpu.memory_space<vmem>>)
      %c4_i32_91 = arith.constant 4 : i32
      %c0_i32_92 = arith.constant 0 : i32
      %118 = tpu.memref_slice %arg2[%64, %c0_i32_92] : memref<512x128xf32, #tpu.memory_space<any>> -> memref<1x128xf32, #tpu.memory_space<any>>
      %c4_i32_93 = arith.constant 4 : i32
      %c0_i32_94 = arith.constant 0 : i32
      %119 = tpu.memref_slice %arg13[%c4_i32_93, %c0_i32_94] : memref<8x128xf32, #tpu.memory_space<vmem>> -> memref<1x128xf32, #tpu.memory_space<vmem>>
      %120 = tpu.memref_slice %arg16[%c4_i32_91] : memref<8x!tpu.dma_semaphore, #tpu.memory_space<semaphore_mem>> -> memref<1x!tpu.dma_semaphore, #tpu.memory_space<semaphore_mem>>
      %121 = tpu.memref_squeeze %120 : memref<1x!tpu.dma_semaphore, #tpu.memory_space<semaphore_mem>> -> memref<!tpu.dma_semaphore, #tpu.memory_space<semaphore_mem>>
      tpu.wait_dma2 semaphore(%121 : memref<!tpu.dma_semaphore, #tpu.memory_space<semaphore_mem>>) src(%118 : memref<1x128xf32, #tpu.memory_space<any>>) dst(%119 : memref<1x128xf32, #tpu.memory_space<vmem>>)
      %c5_i32_95 = arith.constant 5 : i32
      %c0_i32_96 = arith.constant 0 : i32
      %122 = tpu.memref_slice %arg2[%71, %c0_i32_96] : memref<512x128xf32, #tpu.memory_space<any>> -> memref<1x128xf32, #tpu.memory_space<any>>
      %c5_i32_97 = arith.constant 5 : i32
      %c0_i32_98 = arith.constant 0 : i32
      %123 = tpu.memref_slice %arg13[%c5_i32_97, %c0_i32_98] : memref<8x128xf32, #tpu.memory_space<vmem>> -> memref<1x128xf32, #tpu.memory_space<vmem>>
      %124 = tpu.memref_slice %arg16[%c5_i32_95] : memref<8x!tpu.dma_semaphore, #tpu.memory_space<semaphore_mem>> -> memref<1x!tpu.dma_semaphore, #tpu.memory_space<semaphore_mem>>
      %125 = tpu.memref_squeeze %124 : memref<1x!tpu.dma_semaphore, #tpu.memory_space<semaphore_mem>> -> memref<!tpu.dma_semaphore, #tpu.memory_space<semaphore_mem>>
      tpu.wait_dma2 semaphore(%125 : memref<!tpu.dma_semaphore, #tpu.memory_space<semaphore_mem>>) src(%122 : memref<1x128xf32, #tpu.memory_space<any>>) dst(%123 : memref<1x128xf32, #tpu.memory_space<vmem>>)
      %c6_i32_99 = arith.constant 6 : i32
      %c0_i32_100 = arith.constant 0 : i32
      %126 = tpu.memref_slice %arg2[%78, %c0_i32_100] : memref<512x128xf32, #tpu.memory_space<any>> -> memref<1x128xf32, #tpu.memory_space<any>>
      %c6_i32_101 = arith.constant 6 : i32
      %c0_i32_102 = arith.constant 0 : i32
      %127 = tpu.memref_slice %arg13[%c6_i32_101, %c0_i32_102] : memref<8x128xf32, #tpu.memory_space<vmem>> -> memref<1x128xf32, #tpu.memory_space<vmem>>
      %128 = tpu.memref_slice %arg16[%c6_i32_99] : memref<8x!tpu.dma_semaphore, #tpu.memory_space<semaphore_mem>> -> memref<1x!tpu.dma_semaphore, #tpu.memory_space<semaphore_mem>>
      %129 = tpu.memref_squeeze %128 : memref<1x!tpu.dma_semaphore, #tpu.memory_space<semaphore_mem>> -> memref<!tpu.dma_semaphore, #tpu.memory_space<semaphore_mem>>
      tpu.wait_dma2 semaphore(%129 : memref<!tpu.dma_semaphore, #tpu.memory_space<semaphore_mem>>) src(%126 : memref<1x128xf32, #tpu.memory_space<any>>) dst(%127 : memref<1x128xf32, #tpu.memory_space<vmem>>)
      %c7_i32_103 = arith.constant 7 : i32
      %c0_i32_104 = arith.constant 0 : i32
      %130 = tpu.memref_slice %arg2[%85, %c0_i32_104] : memref<512x128xf32, #tpu.memory_space<any>> -> memref<1x128xf32, #tpu.memory_space<any>>
      %c7_i32_105 = arith.constant 7 : i32
      %c0_i32_106 = arith.constant 0 : i32
      %131 = tpu.memref_slice %arg13[%c7_i32_105, %c0_i32_106] : memref<8x128xf32, #tpu.memory_space<vmem>> -> memref<1x128xf32, #tpu.memory_space<vmem>>
      %132 = tpu.memref_slice %arg16[%c7_i32_103] : memref<8x!tpu.dma_semaphore, #tpu.memory_space<semaphore_mem>> -> memref<1x!tpu.dma_semaphore, #tpu.memory_space<semaphore_mem>>
      %133 = tpu.memref_squeeze %132 : memref<1x!tpu.dma_semaphore, #tpu.memory_space<semaphore_mem>> -> memref<!tpu.dma_semaphore, #tpu.memory_space<semaphore_mem>>
      tpu.wait_dma2 semaphore(%133 : memref<!tpu.dma_semaphore, #tpu.memory_space<semaphore_mem>>) src(%130 : memref<1x128xf32, #tpu.memory_space<any>>) dst(%131 : memref<1x128xf32, #tpu.memory_space<vmem>>)
      %c0_107 = arith.constant 0 : index
      %c0_108 = arith.constant 0 : index
      %134 = vector.load %arg13[%c0_107, %c0_108] : memref<8x128xf32, #tpu.memory_space<vmem>>, vector<8x128xf32>
      %135 = arith.truncf %134 : vector<8x128xf32> to vector<8x128xbf16>
      %c0_109 = arith.constant 0 : index
      %c0_110 = arith.constant 0 : index
      %c0_111 = arith.constant 0 : index
      %136 = vector.load %arg5[%c0_109, %c0_110, %c0_111] : memref<2x256x512xbf16, #tpu.memory_space<vmem>>, vector<1x128x512xbf16>
      %137 = vector.shape_cast %136 : vector<1x128x512xbf16> to vector<128x512xbf16>
      %cst_112 = arith.constant dense<0.000000e+00> : vector<8x512xf32>
      %138 = tpu.matmul %135, %137, %cst_112 {dimension_numbers = #tpu.dot_dimension_numbers<[1], [0], [0], [1], [0, 0, 1, 1], [], []>} : vector<8x128xbf16>, vector<128x512xbf16>, vector<8x512xf32> -> vector<8x512xf32>
      %139 = arith.addf %101, %138 : vector<8x512xf32>
      %c0_113 = arith.constant 0 : index
      %c0_114 = arith.constant 0 : index
      %c0_115 = arith.constant 0 : index
      %140 = vector.load %arg6[%c0_113, %c0_114, %c0_115] : memref<2x1x512xf32, #tpu.memory_space<vmem>>, vector<1x1x512xf32>
      %141 = vector.shape_cast %140 : vector<1x1x512xf32> to vector<1x512xf32>
      %142 = vector.broadcast %141 : vector<1x512xf32> to vector<8x512xf32>
      %143 = arith.addf %139, %142 : vector<8x512xf32>
      %144 = vector.extract_strided_slice %143 {offsets = [0, 0], sizes = [8, 128], strides = [1, 1]} : vector<8x512xf32> to vector<8x128xf32>
      %145 = arith.negf %144 : vector<8x128xf32>
      %146 = math.exp %145 : vector<8x128xf32>
      %cst_116 = arith.constant 1.000000e+00 : f32
      %147 = vector.broadcast %cst_116 : f32 to vector<8x128xf32>
      %148 = arith.addf %147, %146 : vector<8x128xf32>
      %149 = arith.divf %147, %148 : vector<8x128xf32>
      %150 = vector.extract_strided_slice %143 {offsets = [0, 128], sizes = [8, 128], strides = [1, 1]} : vector<8x512xf32> to vector<8x128xf32>
      %151 = arith.negf %150 : vector<8x128xf32>
      %152 = math.exp %151 : vector<8x128xf32>
      %cst_117 = arith.constant 1.000000e+00 : f32
      %153 = vector.broadcast %cst_117 : f32 to vector<8x128xf32>
      %154 = arith.addf %153, %152 : vector<8x128xf32>
      %155 = arith.divf %153, %154 : vector<8x128xf32>
      %156 = vector.extract_strided_slice %143 {offsets = [0, 256], sizes = [8, 128], strides = [1, 1]} : vector<8x512xf32> to vector<8x128xf32>
      %157 = math.tanh %156 : vector<8x128xf32>
      %158 = vector.extract_strided_slice %143 {offsets = [0, 384], sizes = [8, 128], strides = [1, 1]} : vector<8x512xf32> to vector<8x128xf32>
      %159 = arith.negf %158 : vector<8x128xf32>
      %160 = math.exp %159 : vector<8x128xf32>
      %cst_118 = arith.constant 1.000000e+00 : f32
      %161 = vector.broadcast %cst_118 : f32 to vector<8x128xf32>
      %162 = arith.addf %161, %160 : vector<8x128xf32>
      %163 = arith.divf %161, %162 : vector<8x128xf32>
      %164 = arith.mulf %155, %97 : vector<8x128xf32>
      %165 = arith.mulf %149, %157 : vector<8x128xf32>
      %166 = arith.addf %164, %165 : vector<8x128xf32>
      %167 = math.tanh %166 : vector<8x128xf32>
      %168 = arith.mulf %163, %167 : vector<8x128xf32>
      %c0_119 = arith.constant 0 : index
      %c0_120 = arith.constant 0 : index
      %c0_121 = arith.constant 0 : index
      %169 = vector.load %arg10[%c0_119, %c0_120, %c0_121] : memref<2x8x128xf32, #tpu.memory_space<vmem>>, vector<1x8x128xf32>
      %170 = vector.shape_cast %169 : vector<1x8x128xf32> to vector<8x128xf32>
      %171 = vector.shape_cast %168 : vector<8x128xf32> to vector<1x8x128xf32>
      tpu.vector_store %arg10[%c0_119, %c0_120, %c0_121], %171 {strides = array<i32>} : memref<2x8x128xf32, #tpu.memory_space<vmem>>, vector<1x8x128xf32>,
      %c0_122 = arith.constant 0 : index
      %c0_123 = arith.constant 0 : index
      %c0_124 = arith.constant 0 : index
      %172 = vector.load %arg11[%c0_122, %c0_123, %c0_124] : memref<2x8x128xf32, #tpu.memory_space<vmem>>, vector<1x8x128xf32>
      %173 = vector.shape_cast %172 : vector<1x8x128xf32> to vector<8x128xf32>
      %174 = vector.shape_cast %166 : vector<8x128xf32> to vector<1x8x128xf32>
      tpu.vector_store %arg11[%c0_122, %c0_123, %c0_124], %174 {strides = array<i32>} : memref<2x8x128xf32, #tpu.memory_space<vmem>>, vector<1x8x128xf32>,
      %c1_125 = arith.constant 1 : index
      %c0_126 = arith.constant 0 : index
      %c0_127 = arith.constant 0 : index
      %175 = vector.load %arg3[%c1_125, %c0_126, %c0_127] : memref<2x8x128xf32, #tpu.memory_space<vmem>>, vector<1x8x128xf32>
      %176 = vector.shape_cast %175 : vector<1x8x128xf32> to vector<8x128xf32>
      %c1_128 = arith.constant 1 : index
      %c0_129 = arith.constant 0 : index
      %c0_130 = arith.constant 0 : index
      %177 = vector.load %arg4[%c1_128, %c0_129, %c0_130] : memref<2x8x128xf32, #tpu.memory_space<vmem>>, vector<1x8x128xf32>
      %178 = vector.shape_cast %177 : vector<1x8x128xf32> to vector<8x128xf32>
      %179 = arith.truncf %168 : vector<8x128xf32> to vector<8x128xbf16>
      %c1_131 = arith.constant 1 : index
      %c0_132 = arith.constant 0 : index
      %c0_133 = arith.constant 0 : index
      %180 = vector.load %arg5[%c1_131, %c0_132, %c0_133] : memref<2x256x512xbf16, #tpu.memory_space<vmem>>, vector<1x128x512xbf16>
      %181 = vector.shape_cast %180 : vector<1x128x512xbf16> to vector<128x512xbf16>
      %cst_134 = arith.constant dense<0.000000e+00> : vector<8x512xf32>
      %182 = tpu.matmul %179, %181, %cst_134 {dimension_numbers = #tpu.dot_dimension_numbers<[1], [0], [0], [1], [0, 0, 1, 1], [], []>} : vector<8x128xbf16>, vector<128x512xbf16>, vector<8x512xf32> -> vector<8x512xf32>
      %183 = arith.truncf %176 : vector<8x128xf32> to vector<8x128xbf16>
      %c1_135 = arith.constant 1 : index
      %c128_136 = arith.constant 128 : index
      %c0_137 = arith.constant 0 : index
      %184 = vector.load %arg5[%c1_135, %c128_136, %c0_137] : memref<2x256x512xbf16, #tpu.memory_space<vmem>>, vector<1x128x512xbf16>
      %185 = vector.shape_cast %184 : vector<1x128x512xbf16> to vector<128x512xbf16>
      %cst_138 = arith.constant dense<0.000000e+00> : vector<8x512xf32>
      %186 = tpu.matmul %183, %185, %cst_138 {dimension_numbers = #tpu.dot_dimension_numbers<[1], [0], [0], [1], [0, 0, 1, 1], [], []>} : vector<8x128xbf16>, vector<128x512xbf16>, vector<8x512xf32> -> vector<8x512xf32>
      %187 = arith.addf %182, %186 : vector<8x512xf32>
      %c1_139 = arith.constant 1 : index
      %c0_140 = arith.constant 0 : index
      %c0_141 = arith.constant 0 : index
      %188 = vector.load %arg6[%c1_139, %c0_140, %c0_141] : memref<2x1x512xf32, #tpu.memory_space<vmem>>, vector<1x1x512xf32>
      %189 = vector.shape_cast %188 : vector<1x1x512xf32> to vector<1x512xf32>
      %190 = vector.broadcast %189 : vector<1x512xf32> to vector<8x512xf32>
      %191 = arith.addf %187, %190 : vector<8x512xf32>
      %192 = vector.extract_strided_slice %191 {offsets = [0, 0], sizes = [8, 128], strides = [1, 1]} : vector<8x512xf32> to vector<8x128xf32>
      %193 = arith.negf %192 : vector<8x128xf32>
      %194 = math.exp %193 : vector<8x128xf32>
      %cst_142 = arith.constant 1.000000e+00 : f32
      %195 = vector.broadcast %cst_142 : f32 to vector<8x128xf32>
      %196 = arith.addf %195, %194 : vector<8x128xf32>
      %197 = arith.divf %195, %196 : vector<8x128xf32>
      %198 = vector.extract_strided_slice %191 {offsets = [0, 128], sizes = [8, 128], strides = [1, 1]} : vector<8x512xf32> to vector<8x128xf32>
      %199 = arith.negf %198 : vector<8x128xf32>
      %200 = math.exp %199 : vector<8x128xf32>
      %cst_143 = arith.constant 1.000000e+00 : f32
      %201 = vector.broadcast %cst_143 : f32 to vector<8x128xf32>
      %202 = arith.addf %201, %200 : vector<8x128xf32>
      %203 = arith.divf %201, %202 : vector<8x128xf32>
      %204 = vector.extract_strided_slice %191 {offsets = [0, 256], sizes = [8, 128], strides = [1, 1]} : vector<8x512xf32> to vector<8x128xf32>
      %205 = math.tanh %204 : vector<8x128xf32>
      %206 = vector.extract_strided_slice %191 {offsets = [0, 384], sizes = [8, 128], strides = [1, 1]} : vector<8x512xf32> to vector<8x128xf32>
      %207 = arith.negf %206 : vector<8x128xf32>
      %208 = math.exp %207 : vector<8x128xf32>
      %cst_144 = arith.constant 1.000000e+00 : f32
      %209 = vector.broadcast %cst_144 : f32 to vector<8x128xf32>
      %210 = arith.addf %209, %208 : vector<8x128xf32>
      %211 = arith.divf %209, %210 : vector<8x128xf32>
      %212 = arith.mulf %203, %178 : vector<8x128xf32>
      %213 = arith.mulf %197, %205 : vector<8x128xf32>
      %214 = arith.addf %212, %213 : vector<8x128xf32>
      %215 = math.tanh %214 : vector<8x128xf32>
      %216 = arith.mulf %211, %215 : vector<8x128xf32>
      %c1_145 = arith.constant 1 : index
      %c0_146 = arith.constant 0 : index
      %c0_147 = arith.constant 0 : index
      %217 = vector.load %arg10[%c1_145, %c0_146, %c0_147] : memref<2x8x128xf32, #tpu.memory_space<vmem>>, vector<1x8x128xf32>
      %218 = vector.shape_cast %217 : vector<1x8x128xf32> to vector<8x128xf32>
      %219 = vector.shape_cast %216 : vector<8x128xf32> to vector<1x8x128xf32>
      tpu.vector_store %arg10[%c1_145, %c0_146, %c0_147], %219 {strides = array<i32>} : memref<2x8x128xf32, #tpu.memory_space<vmem>>, vector<1x8x128xf32>,
      %c1_148 = arith.constant 1 : index
      %c0_149 = arith.constant 0 : index
      %c0_150 = arith.constant 0 : index
      %220 = vector.load %arg11[%c1_148, %c0_149, %c0_150] : memref<2x8x128xf32, #tpu.memory_space<vmem>>, vector<1x8x128xf32>
      %221 = vector.shape_cast %220 : vector<1x8x128xf32> to vector<8x128xf32>
      %222 = vector.shape_cast %214 : vector<8x128xf32> to vector<1x8x128xf32>
      tpu.vector_store %arg11[%c1_148, %c0_149, %c0_150], %222 {strides = array<i32>} : memref<2x8x128xf32, #tpu.memory_space<vmem>>, vector<1x8x128xf32>,
      %223 = arith.truncf %216 : vector<8x128xf32> to vector<8x128xbf16>
      %c0_151 = arith.constant 0 : index
      %c0_152 = arith.constant 0 : index
      %224 = vector.load %arg12[%c0_151, %c0_152] : memref<8x128xbf16, #tpu.memory_space<vmem>>, vector<8x128xbf16>
      tpu.vector_store %arg12[%c0_151, %c0_152], %223 {strides = array<i32>} : memref<8x128xbf16, #tpu.memory_space<vmem>>, vector<8x128xbf16>,
    } else {
    }
    %c256_i32 = arith.constant 256 : i32
    %3 = arith.muli %arg0, %c256_i32 : i32
    %4 = tpu.assume_multiple %3, 128 : i32
    %c0 = arith.constant 0 : index
    %c0_1 = arith.constant 0 : index
    %5 = vector.load %arg12[%c0, %c0_1] : memref<8x128xbf16, #tpu.memory_space<vmem>>, vector<8x128xbf16>
    %c0_2 = arith.constant 0 : index
    %c0_3 = arith.constant 0 : index
    %c0_4 = arith.constant 0 : index
    %6 = vector.load %arg7[%c0_2, %c0_3, %c0_4] : memref<1x128x256xbf16, #tpu.memory_space<vmem>>, vector<1x128x256xbf16>
    %7 = vector.shape_cast %6 : vector<1x128x256xbf16> to vector<128x256xbf16>
    %cst = arith.constant dense<0.000000e+00> : vector<8x256xf32>
    %8 = tpu.matmul %5, %7, %cst {dimension_numbers = #tpu.dot_dimension_numbers<[1], [0], [0], [1], [0, 0, 1, 1], [], []>} : vector<8x128xbf16>, vector<128x256xbf16>, vector<8x256xf32> -> vector<8x256xf32>
    %c0_5 = arith.constant 0 : index
    %9 = arith.index_cast %4 : i32 to index
    %10 = vector.load %arg8[%c0_5, %9] : memref<1x512xf32, #tpu.memory_space<vmem>>, vector<1x256xf32>
    %11 = vector.broadcast %10 : vector<1x256xf32> to vector<8x256xf32>
    %12 = arith.addf %8, %11 : vector<8x256xf32>
    %c0_6 = arith.constant 0 : index
    %13 = arith.index_cast %4 : i32 to index
    %14 = vector.load %arg9[%c0_6, %13] : memref<8x512xf32, #tpu.memory_space<vmem>>, vector<8x256xf32>
    tpu.vector_store %arg9[%c0_6, %13], %12 {strides = array<i32>} : memref<8x512xf32, #tpu.memory_space<vmem>>, vector<8x256xf32>,
    %c0_7 = arith.constant 0 : index
    %c0_8 = arith.constant 0 : index
    %15 = vector.load %arg14[%c0_7, %c0_8] : memref<8x1xf32, #tpu.memory_space<vmem>>, vector<8x1xf32>
    %cst_9 = arith.constant dense<0xFF800000> : vector<8xf32>
    %16 = vector.multi_reduction <maximumf>, %12, %cst_9 [1] : vector<8x256xf32> to vector<8xf32>
    %17 = vector.shape_cast %16 : vector<8xf32> to vector<8x1xf32>
    %18 = arith.maximumf %15, %17 : vector<8x1xf32>
    %c0_10 = arith.constant 0 : index
    %c0_11 = arith.constant 0 : index
    %19 = vector.load %arg15[%c0_10, %c0_11] : memref<8x1xf32, #tpu.memory_space<vmem>>, vector<8x1xf32>
    %20 = arith.subf %15, %18 : vector<8x1xf32>
    %21 = math.exp %20 : vector<8x1xf32>
    %22 = arith.mulf %19, %21 : vector<8x1xf32>
    %23 = vector.broadcast %18 : vector<8x1xf32> to vector<8x256xf32>
    %24 = arith.subf %12, %23 : vector<8x256xf32>
    %25 = math.exp %24 : vector<8x256xf32>
    %cst_12 = arith.constant dense<0.000000e+00> : vector<8xf32>
    %26 = vector.multi_reduction <add>, %25, %cst_12 [1] : vector<8x256xf32> to vector<8xf32>
    %27 = vector.shape_cast %26 : vector<8xf32> to vector<8x1xf32>
    %28 = arith.addf %22, %27 : vector<8x1xf32>
    %c0_13 = arith.constant 0 : index
    %c0_14 = arith.constant 0 : index
    %29 = vector.load %arg15[%c0_13, %c0_14] : memref<8x1xf32, #tpu.memory_space<vmem>>, vector<8x1xf32>
    tpu.vector_store %arg15[%c0_13, %c0_14], %28 {strides = array<i32>} : memref<8x1xf32, #tpu.memory_space<vmem>>, vector<8x1xf32>,
    %c0_15 = arith.constant 0 : index
    %c0_16 = arith.constant 0 : index
    %30 = vector.load %arg14[%c0_15, %c0_16] : memref<8x1xf32, #tpu.memory_space<vmem>>, vector<8x1xf32>
    tpu.vector_store %arg14[%c0_15, %c0_16], %18 {strides = array<i32>} : memref<8x1xf32, #tpu.memory_space<vmem>>, vector<8x1xf32>,
    %c1_i32 = arith.constant 1 : i32
    %31 = arith.cmpi eq, %arg0, %c1_i32 : i32
    %32 = arith.extui %31 : i1 to i32
    %c0_i32_17 = arith.constant 0 : i32
    %33 = arith.cmpi ne, %32, %c0_i32_17 : i32
    scf.if %33 {
      %c0_18 = arith.constant 0 : index
      %c0_19 = arith.constant 0 : index
      %34 = vector.load %arg14[%c0_18, %c0_19] : memref<8x1xf32, #tpu.memory_space<vmem>>, vector<8x1xf32>
      %c0_20 = arith.constant 0 : index
      %c0_21 = arith.constant 0 : index
      %35 = vector.load %arg15[%c0_20, %c0_21] : memref<8x1xf32, #tpu.memory_space<vmem>>, vector<8x1xf32>
      %36 = math.log %35 : vector<8x1xf32>
      %37 = arith.addf %34, %36 : vector<8x1xf32>
      %c0_22 = arith.constant 0 : index
      %c0_23 = arith.constant 0 : index
      %38 = vector.load %arg9[%c0_22, %c0_23] : memref<8x512xf32, #tpu.memory_space<vmem>>, vector<8x512xf32>
      %39 = vector.broadcast %37 : vector<8x1xf32> to vector<8x512xf32>
      %40 = arith.subf %38, %39 : vector<8x512xf32>
      %c0_24 = arith.constant 0 : index
      %c0_25 = arith.constant 0 : index
      %41 = vector.load %arg9[%c0_24, %c0_25] : memref<8x512xf32, #tpu.memory_space<vmem>>, vector<8x512xf32>
      tpu.vector_store %arg9[%c0_24, %c0_25], %40 {strides = array<i32>} : memref<8x512xf32, #tpu.memory_space<vmem>>, vector<8x512xf32>,
    } else {
    }
    return
  }
  func.func @transform_0(%arg0: i32) -> i32 {
    %c0_i32 = arith.constant 0 : i32
    %c0_i32_0 = arith.constant 0 : i32
    return %c0_i32 : i32
  }
  func.func @transform_2(%arg0: i32) -> (i32, i32, i32) {
    %c0_i32 = arith.constant 0 : i32
    %c0_i32_0 = arith.constant 0 : i32
    %c0_i32_1 = arith.constant 0 : i32
    %c0_i32_2 = arith.constant 0 : i32
    return %c0_i32, %c0_i32_0, %c0_i32_1 : i32, i32, i32
  }
  func.func @transform_3(%arg0: i32) -> (i32, i32, i32) {
    %c0_i32 = arith.constant 0 : i32
    %c0_i32_0 = arith.constant 0 : i32
    %c0_i32_1 = arith.constant 0 : i32
    %c0_i32_2 = arith.constant 0 : i32
    return %c0_i32, %c0_i32_0, %c0_i32_1 : i32, i32, i32
  }
  func.func @transform_4(%arg0: i32) -> (i32, i32, i32) {
    %c0_i32 = arith.constant 0 : i32
    %c0_i32_0 = arith.constant 0 : i32
    %c0_i32_1 = arith.constant 0 : i32
    %c0_i32_2 = arith.constant 0 : i32
    return %c0_i32, %c0_i32_0, %c0_i32_1 : i32, i32, i32
  }
  func.func @transform_5(%arg0: i32) -> (i32, i32, i32) {
    %c0_i32 = arith.constant 0 : i32
    %c0_i32_0 = arith.constant 0 : i32
    %c0_i32_1 = arith.constant 0 : i32
    %c0_i32_2 = arith.constant 0 : i32
    return %c0_i32, %c0_i32_0, %c0_i32_1 : i32, i32, i32
  }
  func.func @transform_6(%arg0: i32) -> (i32, i32, i32) {
    %c0_i32 = arith.constant 0 : i32
    %c0_i32_0 = arith.constant 0 : i32
    %c0_i32_1 = arith.constant 0 : i32
    return %arg0, %c0_i32, %c0_i32_0 : i32, i32, i32
  }
  func.func @transform_7(%arg0: i32) -> (i32, i32) {
    %c0_i32 = arith.constant 0 : i32
    %c0_i32_0 = arith.constant 0 : i32
    %c0_i32_1 = arith.constant 0 : i32
    return %c0_i32, %c0_i32_0 : i32, i32
  }
  func.func @transform_8(%arg0: i32) -> (i32, i32) {
    %c0_i32 = arith.constant 0 : i32
    %c0_i32_0 = arith.constant 0 : i32
    %c0_i32_1 = arith.constant 0 : i32
    return %c0_i32, %c0_i32_0 : i32, i32
  }
  func.func @transform_9(%arg0: i32) -> (i32, i32, i32) {
    %c0_i32 = arith.constant 0 : i32
    %c0_i32_0 = arith.constant 0 : i32
    %c0_i32_1 = arith.constant 0 : i32
    %c0_i32_2 = arith.constant 0 : i32
    return %c0_i32, %c0_i32_0, %c0_i32_1 : i32, i32, i32
  }
  func.func @transform_10(%arg0: i32) -> (i32, i32, i32) {
    %c0_i32 = arith.constant 0 : i32
    %c0_i32_0 = arith.constant 0 : i32
    %c0_i32_1 = arith.constant 0 : i32
    %c0_i32_2 = arith.constant 0 : i32
    return %c0_i32, %c0_i32_0, %c0_i32_1 : i32, i32, i32
  }
}

</mosaic_0001>

<llo_original>
// kernel: tpu_custom_call.1
$region0: #{tpu_custom_call.1}
  #allocation0 [shape = 'u32[]', space=smem, size = 0x4, offset = 0x4, fixed_abs, tag = 'smem constant byte address 0x4 - core index']
  #allocation1 [shape = 'u32[144,128]{1,0:T(1,128)}', space=vmem, size = 0x12000, scoped, tag = 'internal scratch']
  #allocation2 [shape = 'bf16[8,128]{1,0:T(8,128)(2,1)}', space=vmem, size = 0x800, scoped, tag = 'scratch operand']
  #allocation3 [shape = 'f32[8,128]{1,0:T(8,128)}', space=vmem, size = 0x1000, scoped, tag = 'scratch operand']
  #allocation4 [shape = 'f32[8,1]{1,0:T(8,128)}', space=vmem, size = 0x1000, scoped, tag = 'scratch operand']
  #allocation5 [shape = 'f32[8,1]{1,0:T(8,128)}', space=vmem, size = 0x1000, scoped, tag = 'scratch operand']
  #allocation6 [shape = 's32[8]{0}', space=sflag, size = 0x20, scoped, tag = 'scratch operand']
  #allocation21 [shape = 's32[]', space=sflag, size = 0x4, offset = 0, fixed_abs, tag = 'sflag constant byte address 0x0 - dummy sync flag']
  #allocation22 [shape = 's32[]', space=sflag, size = 0x4, offset = 0, fixed_abs, tag = 'sflag constant byte address 0x0 - dummy sync flag']
  #allocation23 [shape = 'u32[]', space=smem, size = 0x4, offset = 0x44, fixed_abs, tag = 'smem constant byte address 0x44 - assertion arg 0']
  #allocation24 [shape = 'u32[]', space=smem, size = 0x4, offset = 0x48, fixed_abs, tag = 'smem constant byte address 0x48 - assertion arg 1']
  #allocation25 [shape = 's32[]', space=sflag, size = 0x4, offset = 0, fixed_abs, tag = 'sflag constant byte address 0x0 - dummy sync flag']
  #allocation26 [shape = 's32[]', space=sflag, size = 0x4, offset = 0, fixed_abs, tag = 'sflag constant byte address 0x0 - dummy sync flag']
  #allocation27 [shape = 's32[]', space=sflag, size = 0x4, offset = 0, fixed_abs, tag = 'sflag constant byte address 0x0 - dummy sync flag']
  #allocation28 [shape = 's32[]', space=sflag, size = 0x4, offset = 0, fixed_abs, tag = 'sflag constant byte address 0x0 - dummy sync flag']
  #allocation29 [shape = 's32[]', space=sflag, size = 0x4, offset = 0, fixed_abs, tag = 'sflag constant byte address 0x0 - dummy sync flag']
  #allocation30 [shape = 's32[]', space=sflag, size = 0x4, offset = 0, fixed_abs, tag = 'sflag constant byte address 0x0 - dummy sync flag']
  #allocation31 [shape = 's32[]', space=sflag, size = 0x4, offset = 0, fixed_abs, tag = 'sflag constant byte address 0x0 - dummy sync flag']
  #allocation32 [shape = 's32[]', space=sflag, size = 0x4, offset = 0, fixed_abs, tag = 'sflag constant byte address 0x0 - dummy sync flag']
  #allocation33 [shape = 's32[]', space=sflag, size = 0x4, offset = 0, fixed_abs, tag = 'sflag constant byte address 0x0 - dummy sync flag']
  #allocation34 [shape = 's32[]', space=sflag, size = 0x4, offset = 0, fixed_abs, tag = 'sflag constant byte address 0x0 - dummy sync flag']
  #allocation35 [shape = 's32[]', space=sflag, size = 0x4, offset = 0, fixed_abs, tag = 'sflag constant byte address 0x0 - dummy sync flag']
  #allocation36 [shape = 's32[]', space=sflag, size = 0x4, offset = 0, fixed_abs, tag = 'sflag constant byte address 0x0 - dummy sync flag']
  #allocation37 [shape = 's32[]', space=sflag, size = 0x4, offset = 0, fixed_abs, tag = 'sflag constant byte address 0x0 - dummy sync flag']
  #allocation38 [shape = 's32[]', space=sflag, size = 0x4, offset = 0, fixed_abs, tag = 'sflag constant byte address 0x0 - dummy sync flag']
  %s0 = inlined_call_operand.vmem [shape: s32[8], index: 0, kind: input, shape index: {}]
  %s1 = inlined_call_operand.hbm [shape: f32[512,128], index: 1, kind: input, shape index: {}]
  %s2 = inlined_call_operand.hbm [shape: f32[2,8,128], index: 2, kind: input, shape index: {}, may-alias: {2,9}]
  %s3 = inlined_call_operand.hbm [shape: f32[2,8,128], index: 3, kind: input, shape index: {}, may-alias: {3,10}]
  %s4 = inlined_call_operand.hbm [shape: bf16[2,256,512], index: 4, kind: input, shape index: {}]
  %s5 = inlined_call_operand.vmem [shape: f32[2,1,512], index: 5, kind: input, shape index: {}]
  %s6 = inlined_call_operand.hbm [shape: bf16[2,128,256], index: 6, kind: input, shape index: {}]
  %s7 = inlined_call_operand.vmem [shape: f32[1,512], index: 7, kind: input, shape index: {}]
  %s8 = inlined_call_operand.hbm [shape: f32[8,512], index: 8, kind: output, shape index: {0}]
  %s9 = inlined_call_operand.hbm [shape: f32[2,8,128], index: 9, kind: output, shape index: {1}, may-alias: {2,9}]
  %s10 = inlined_call_operand.hbm [shape: f32[2,8,128], index: 10, kind: output, shape index: {2}, may-alias: {3,10}]
  %11 = xla_tuple %s8, %s9, %s10
  %s12 = sld [smem:[#allocation0]]
  $region137: #{tpu_custom_call.1} parent=0
    _
  %s14 = ssub.s32 1, %s12
  %s15 = scalar_select 0, %s14, %s12
  $region1: #{tpu_custom_call.1} parent=0
    #allocation7 [shape = 'u8[512]{0}', space=smem, size = 0x200, scoped, tag = 'input window, operand 0, single buffered']
    #allocation8 [shape = 's32[2]{0}', space=sflag, size = 0x8, scoped, tag = 'scoped memory for tpu_custom_call.1']
    #allocation9 [shape = 's32[2]{0}', space=sflag, size = 0x8, scoped, tag = 'scoped memory for tpu_custom_call.1']
    #allocation10 [shape = 's32[2]{0}', space=sflag, size = 0x8, scoped, tag = 'scoped memory for tpu_custom_call.1']
    #allocation11 [shape = 'u8[8192]{0}', space=vmem, size = 0x2000, scoped, tag = 'input window, operand 2, single buffered']
    #allocation12 [shape = 'u8[8192]{0}', space=vmem, size = 0x2000, scoped, tag = 'input window, operand 3, single buffered']
    #allocation13 [shape = 's32[1]{0}', space=sflag, size = 0x4, scoped, tag = 'scoped memory for tpu_custom_call.1']
    #allocation14 [shape = 'u8[524288]{0}', space=vmem, size = 0x80000, scoped, tag = 'input window, operand 4, single buffered']
    #allocation15 [shape = 'u8[131072]{0}', space=vmem, size = 0x20000, scoped, tag = 'input window, operand 6']
    #allocation16 [shape = 's32[2]{0}', space=sflag, size = 0x8, scoped, tag = 'scoped memory for tpu_custom_call.1']
    #allocation17 [shape = 'u8[16384]{0}', space=vmem, size = 0x4000, scoped, tag = 'output window, operand 0, single buffered']
    #allocation18 [shape = 'u8[8192]{0}', space=vmem, size = 0x2000, scoped, tag = 'output window, operand 1, single buffered']
    #allocation19 [shape = 's32[1]{0}', space=sflag, size = 0x4, scoped, tag = 'scoped memory for tpu_custom_call.1']
    #allocation20 [shape = 'u8[8192]{0}', space=vmem, size = 0x2000, scoped, tag = 'output window, operand 2, single buffered']
    %16 = vsyncpa [#allocation10], 0
    %17 = vsyncpa [#allocation8], 0
    %18 = vsyncpa [#allocation13], 0
    %19 = vsyncpa [#allocation16], 0
    %s20 = scalar_lea.sflag [#allocation16], 1
    %21 = vsyncpa %s20, 0
    %22 = vsyncpa [#allocation9], 0
    %23 = vsyncpa [#allocation19], 0
    loop: start=0, step=1, limit=4
    $region2: #{tpu_custom_call.1} parent=1 // loop_pre_header
      _
    $region3: #{tpu_custom_call.1} parent=1 // loop_header
      %s25 = sphi 0, %s29
      %p26 = scmp.ge.s32.totalorder %s25, 4
      %s33 = sphi 0, %s33
      %s35 = sphi 0, %s33
      %s36 = sphi 0, %s35
      %s50 = sphi 0, %s36
      %s54 = sphi 0, %s54
      %s56 = sphi 0, %s54
      %s57 = sphi 0, %s56
      %s71 = sphi 0, %s57
      %s75 = sphi 0, %s75
      %s77 = sphi 0, %s75
      %s78 = sphi 0, %s77
      %s92 = sphi 0, %s78
      %s96 = sphi 0, %s96
      %s98 = sphi 0, %s96
      %s99 = sphi 0, %s98
      %s113 = sphi 0, %s99
      %s117 = sphi 0, %s117
      %s119 = sphi 0, %s117
      %s120 = sphi 0, %s119
      %s134 = sphi 0, %s120
      %s140 = sphi 0, %s142
      %s143 = sphi 0, %s140
      %s144 = sphi 0, %s143
      %s160 = sphi 0, %s144
      %s164 = sphi 0, %s164
      %s166 = sphi 0, %s164
      %s167 = sphi 0, %s166
      %s181 = sphi 0, %s167
      %s185 = sphi 0, %s185
      %s187 = sphi 0, %s185
      %s188 = sphi 0, %s187
      %s202 = sphi 0, %s188
      %s206 = sphi 0, %s206
      %s208 = sphi 0, %s206
      %s209 = sphi 0, %s208
      %s223 = sphi 0, %s209
      %s227 = sphi 0, %s227
      %s229 = sphi 0, %s227
      %s230 = sphi 0, %s229
      %s244 = sphi 0, %s230
    $region4: #{tpu_custom_call.1} parent=1 // loop_header_branch
      %28 = sbr.rel (%p26) target = $region8
    $region5: #{tpu_custom_call.1} parent=1 // loop_body
      %s30 = ssub.s32 %s25, 1
      %s31 = ssub.s32 %s25, 2
      %s32 = sadd.s32 %s25, 1
      %s34 = sadd.s32 %s33, 1
      %p37 = scmp.eq.s32.totalorder %s25, 1
      %p38 = scmp.ne.s32.totalorder %s33, %s35
      %p39 = scmp.eq.s32.totalorder %s25, 0
      %p40 = por %p38, %p39
      %p41 = scmp.ne.s32.totalorder %s33, %s35
      %p42 = scmp.eq.s32.totalorder %s30, 1
      %p43 = por %p41, %p42
      %p44 = scmp.ne.s32.totalorder %s35, %s36
      %p45 = scmp.eq.s32.totalorder %s30, 0
      %p46 = por %p44, %p45
      %p47 = scmp.ne.s32.totalorder %s35, %s36
      %p48 = scmp.eq.s32.totalorder %s31, 1
      %p49 = por %p47, %p48
      %p51 = scmp.ne.s32.totalorder %s36, %s50
      %p52 = scmp.eq.s32.totalorder %s31, 0
      %p53 = por %p51, %p52
      %s55 = sadd.s32 %s54, 1
      %p58 = scmp.eq.s32.totalorder %s25, 1
      %p59 = scmp.ne.s32.totalorder %s54, %s56
      %p60 = scmp.eq.s32.totalorder %s25, 0
      %p61 = por %p59, %p60
      %p62 = scmp.ne.s32.totalorder %s54, %s56
      %p63 = scmp.eq.s32.totalorder %s30, 1
      %p64 = por %p62, %p63
      %p65 = scmp.ne.s32.totalorder %s56, %s57
      %p66 = scmp.eq.s32.totalorder %s30, 0
      %p67 = por %p65, %p66
      %p68 = scmp.ne.s32.totalorder %s56, %s57
      %p69 = scmp.eq.s32.totalorder %s31, 1
      %p70 = por %p68, %p69
      %p72 = scmp.ne.s32.totalorder %s57, %s71
      %p73 = scmp.eq.s32.totalorder %s31, 0
      %p74 = por %p72, %p73
      %s76 = sadd.s32 %s75, 1
      %p79 = scmp.eq.s32.totalorder %s25, 1
      %p80 = scmp.ne.s32.totalorder %s75, %s77
      %p81 = scmp.eq.s32.totalorder %s25, 0
      %p82 = por %p80, %p81
      %p83 = scmp.ne.s32.totalorder %s75, %s77
      %p84 = scmp.eq.s32.totalorder %s30, 1
      %p85 = por %p83, %p84
      %p86 = scmp.ne.s32.totalorder %s77, %s78
      %p87 = scmp.eq.s32.totalorder %s30, 0
      %p88 = por %p86, %p87
      %p89 = scmp.ne.s32.totalorder %s77, %s78
      %p90 = scmp.eq.s32.totalorder %s31, 1
      %p91 = por %p89, %p90
      %p93 = scmp.ne.s32.totalorder %s78, %s92
      %p94 = scmp.eq.s32.totalorder %s31, 0
      %p95 = por %p93, %p94
      %s97 = sadd.s32 %s96, 1
      %p100 = scmp.eq.s32.totalorder %s25, 1
      %p101 = scmp.ne.s32.totalorder %s96, %s98
      %p102 = scmp.eq.s32.totalorder %s25, 0
      %p103 = por %p101, %p102
      %p104 = scmp.ne.s32.totalorder %s96, %s98
      %p105 = scmp.eq.s32.totalorder %s30, 1
      %p106 = por %p104, %p105
      %p107 = scmp.ne.s32.totalorder %s98, %s99
      %p108 = scmp.eq.s32.totalorder %s30, 0
      %p109 = por %p107, %p108
      %p110 = scmp.ne.s32.totalorder %s98, %s99
      %p111 = scmp.eq.s32.totalorder %s31, 1
      %p112 = por %p110, %p111
      %p114 = scmp.ne.s32.totalorder %s99, %s113
      %p115 = scmp.eq.s32.totalorder %s31, 0
      %p116 = por %p114, %p115
      %s118 = sadd.s32 %s117, 1
      %p121 = scmp.eq.s32.totalorder %s25, 1
      %p122 = scmp.ne.s32.totalorder %s117, %s119
      %p123 = scmp.eq.s32.totalorder %s25, 0
      %p124 = por %p122, %p123
      %p125 = scmp.ne.s32.totalorder %s117, %s119
      %p126 = scmp.eq.s32.totalorder %s30, 1
      %p127 = por %p125, %p126
      %p128 = scmp.ne.s32.totalorder %s119, %s120
      %p129 = scmp.eq.s32.totalorder %s30, 0
      %p130 = por %p128, %p129
      %p131 = scmp.ne.s32.totalorder %s119, %s120
      %p132 = scmp.eq.s32.totalorder %s31, 1
      %p133 = por %p131, %p132
      %p135 = scmp.ne.s32.totalorder %s120, %s134
      %p136 = scmp.eq.s32.totalorder %s31, 0
      %p137 = por %p135, %p136
      %s138 = ssub.s32 %s25, %s32
      %p139 = scmp.eq.s32.totalorder %s138, 0
      %s141 = sadd.s32 %s140, 1
      %s142 = scalar_select %p139, %s140, %s141
      %p145 = pneg %p139
      %p146 = scmp.eq.s32.totalorder %s25, 1
      %p147 = por %p145, %p146
      %p148 = scmp.ne.s32.totalorder %s140, %s143
      %p149 = scmp.eq.s32.totalorder %s25, 0
      %p150 = por %p148, %p149
      %p151 = scmp.ne.s32.totalorder %s140, %s143
      %p152 = scmp.eq.s32.totalorder %s30, 1
      %p153 = por %p151, %p152
      %p154 = scmp.ne.s32.totalorder %s143, %s144
      %p155 = scmp.eq.s32.totalorder %s30, 0
      %p156 = por %p154, %p155
      %p157 = scmp.ne.s32.totalorder %s143, %s144
      %p158 = scmp.eq.s32.totalorder %s31, 1
      %p159 = por %p157, %p158
      %p161 = scmp.ne.s32.totalorder %s144, %s160
      %p162 = scmp.eq.s32.totalorder %s31, 0
      %p163 = por %p161, %p162
      %s165 = sadd.s32 %s164, 1
      %p168 = scmp.eq.s32.totalorder %s25, 1
      %p169 = scmp.ne.s32.totalorder %s164, %s166
      %p170 = scmp.eq.s32.totalorder %s25, 0
      %p171 = por %p169, %p170
      %p172 = scmp.ne.s32.totalorder %s164, %s166
      %p173 = scmp.eq.s32.totalorder %s30, 1
      %p174 = por %p172, %p173
      %p175 = scmp.ne.s32.totalorder %s166, %s167
      %p176 = scmp.eq.s32.totalorder %s30, 0
      %p177 = por %p175, %p176
      %p178 = scmp.ne.s32.totalorder %s166, %s167
      %p179 = scmp.eq.s32.totalorder %s31, 1
      %p180 = por %p178, %p179
      %p182 = scmp.ne.s32.totalorder %s167, %s181
      %p183 = scmp.eq.s32.totalorder %s31, 0
      %p184 = por %p182, %p183
      %s186 = sadd.s32 %s185, 1
      %p189 = scmp.eq.s32.totalorder %s25, 1
      %p190 = scmp.ne.s32.totalorder %s185, %s187
      %p191 = scmp.eq.s32.totalorder %s25, 0
      %p192 = por %p190, %p191
      %p193 = scmp.ne.s32.totalorder %s185, %s187
      %p194 = scmp.eq.s32.totalorder %s30, 1
      %p195 = por %p193, %p194
      %p196 = scmp.ne.s32.totalorder %s187, %s188
      %p197 = scmp.eq.s32.totalorder %s30, 0
      %p198 = por %p196, %p197
      %p199 = scmp.ne.s32.totalorder %s187, %s188
      %p200 = scmp.eq.s32.totalorder %s31, 1
      %p201 = por %p199, %p200
      %p203 = scmp.ne.s32.totalorder %s188, %s202
      %p204 = scmp.eq.s32.totalorder %s31, 0
      %p205 = por %p203, %p204
      %s207 = sadd.s32 %s206, 1
      %p210 = scmp.eq.s32.totalorder %s25, 1
      %p211 = scmp.ne.s32.totalorder %s206, %s208
      %p212 = scmp.eq.s32.totalorder %s25, 0
      %p213 = por %p211, %p212
      %p214 = scmp.ne.s32.totalorder %s206, %s208
      %p215 = scmp.eq.s32.totalorder %s30, 1
      %p216 = por %p214, %p215
      %p217 = scmp.ne.s32.totalorder %s208, %s209
      %p218 = scmp.eq.s32.totalorder %s30, 0
      %p219 = por %p217, %p218
      %p220 = scmp.ne.s32.totalorder %s208, %s209
      %p221 = scmp.eq.s32.totalorder %s31, 1
      %p222 = por %p220, %p221
      %p224 = scmp.ne.s32.totalorder %s209, %s223
      %p225 = scmp.eq.s32.totalorder %s31, 0
      %p226 = por %p224, %p225
      %s228 = sadd.s32 %s227, 1
      %p231 = scmp.eq.s32.totalorder %s25, 1
      %p232 = scmp.ne.s32.totalorder %s227, %s229
      %p233 = scmp.eq.s32.totalorder %s25, 0
      %p234 = por %p232, %p233
      %p235 = scmp.ne.s32.totalorder %s227, %s229
      %p236 = scmp.eq.s32.totalorder %s30, 1
      %p237 = por %p235, %p236
      %p238 = scmp.ne.s32.totalorder %s229, %s230
      %p239 = scmp.eq.s32.totalorder %s30, 0
      %p240 = por %p238, %p239
      %p241 = scmp.ne.s32.totalorder %s229, %s230
      %p242 = scmp.eq.s32.totalorder %s31, 1
      %p243 = por %p241, %p242
      %p245 = scmp.ne.s32.totalorder %s230, %s244
      %p246 = scmp.eq.s32.totalorder %s31, 0
      %p247 = por %p245, %p246
      %p248 = scmp.le.s32.totalorder 1, %s25
      %p249 = scmp.lt.s32.totalorder %s25, 3
      %p250 = pnand %p248, %p249
      %p251 = pneg %p250
      // Predicated region
      $region9: #{tpu_custom_call.1} parent=5 // pred_check
        _
      $region10: #{tpu_custom_call.1} parent=5 // pred_check_branch
        %253 = sbr.rel (%p250) target = $region12
      $region11: #{tpu_custom_call.1} parent=5 // pred_region
        %s254 = ssub.s32 %s25, 1
        // Predicated region
        $region13: #{tpu_custom_call.1} parent=11 // pred_check
          %p255 = pneg %p46
        $region14: #{tpu_custom_call.1} parent=11 // pred_check_branch
          %257 = sbr.rel (%p255) target = $region16
        $region15: #{tpu_custom_call.1} parent=11 // pred_region
          %s259 = ssub.s32 16, 16
          %260 = vsyncadd [#allocation10], %s259
          %s262 = sshll.u32 %s0, 4
          %s263 = int_to_ptr.vmem [resolvable:$true] %s262
          %265 = dma.vmem_to_smem %s263, 16, [#allocation7], [#allocation10]
        $region16: #{tpu_custom_call.1} parent=11 // pred_fallthru
          _
        // Predicated region
        $region17: #{tpu_custom_call.1} parent=11 // pred_check
          %p266 = pneg %p67
        $region18: #{tpu_custom_call.1} parent=11 // pred_check_branch
          %268 = sbr.rel (%p266) target = $region20
        $region19: #{tpu_custom_call.1} parent=11 // pred_region
          %s270 = ssub.s32 256, 256
          %271 = vsyncadd [#allocation8], %s270
          %s272 = sshll.u32 [#allocation11], 4
          %s273 = int_to_ptr.vmem [resolvable:$true] %s272
          %278 = dma.hbm_to_vmem [thread:$0]  %s2, 256, %s273, [#allocation8], 128, 128, 8
        $region20: #{tpu_custom_call.1} parent=11 // pred_fallthru
          _
        // Predicated region
        $region21: #{tpu_custom_call.1} parent=11 // pred_check
          %p279 = pneg %p88
        $region22: #{tpu_custom_call.1} parent=11 // pred_check_branch
          %281 = sbr.rel (%p279) target = $region24
        $region23: #{tpu_custom_call.1} parent=11 // pred_region
          %s283 = ssub.s32 256, 256
          %284 = vsyncadd [#allocation13], %s283
          %s285 = sshll.u32 [#allocation12], 4
          %s286 = int_to_ptr.vmem [resolvable:$true] %s285
          %291 = dma.hbm_to_vmem [thread:$0]  %s3, 256, %s286, [#allocation13], 128, 128, 8
        $region24: #{tpu_custom_call.1} parent=11 // pred_fallthru
          _
        // Predicated region
        $region25: #{tpu_custom_call.1} parent=11 // pred_check
          %p292 = pneg %p109
        $region26: #{tpu_custom_call.1} parent=11 // pred_check_branch
          %294 = sbr.rel (%p292) target = $region28
        $region27: #{tpu_custom_call.1} parent=11 // pred_region
          %s296 = ssub.s32 16384, 16384
          %297 = vsyncadd [#allocation13], %s296
          %s298 = sshll.u32 [#allocation14], 4
          %s299 = int_to_ptr.vmem [resolvable:$true] %s298
          %304 = dma.hbm_to_vmem [thread:$0]  %s4, 16384, %s299, [#allocation13], 256, 256, 16
        $region28: #{tpu_custom_call.1} parent=11 // pred_fallthru
          _
        // Predicated region
        $region29: #{tpu_custom_call.1} parent=11 // pred_check
          %p305 = pneg %p130
        $region30: #{tpu_custom_call.1} parent=11 // pred_check_branch
          %307 = sbr.rel (%p305) target = $region32
        $region31: #{tpu_custom_call.1} parent=11 // pred_region
          _
        $region32: #{tpu_custom_call.1} parent=11 // pred_fallthru
          _
        // Predicated region
        $region33: #{tpu_custom_call.1} parent=11 // pred_check
          %p308 = pneg %p177
        $region34: #{tpu_custom_call.1} parent=11 // pred_check_branch
          %310 = sbr.rel (%p308) target = $region36
        $region35: #{tpu_custom_call.1} parent=11 // pred_region
          _
        $region36: #{tpu_custom_call.1} parent=11 // pred_fallthru
          _
      $region12: #{tpu_custom_call.1} parent=5 // pred_fallthru
        _
      %p311 = scmp.lt.s32.totalorder %s25, 2
      // Predicated region
      $region37: #{tpu_custom_call.1} parent=5 // pred_check
        %p312 = pneg %p311
      $region38: #{tpu_custom_call.1} parent=5 // pred_check_branch
        %314 = sbr.rel (%p312) target = $region40
      $region39: #{tpu_custom_call.1} parent=5 // pred_region
        // Predicated region
        $region41: #{tpu_custom_call.1} parent=39 // pred_check
          %p315 = pneg %p150
        $region42: #{tpu_custom_call.1} parent=39 // pred_check_branch
          %317 = sbr.rel (%p315) target = $region44
        $region43: #{tpu_custom_call.1} parent=39 // pred_region
          %s318 = sand.u32 %s140, 1
          %s319 = scalar_lea.sflag [#allocation16], %s318
          %s320 = sand.u32 %s140, 1
          %s321 = smul.addr %s320, 128
          %s322 = scalar_lea.vmem [#allocation15], %s321
          %s324 = ssub.s32 2048, 2048
          %325 = vsyncadd %s319, %s324
          %s326 = smul.addr %s25, 32
          %s327 = smul.addr %s326, 64
          %s328 = scalar_lea.hbm %s6, %s327
          %s329 = sshll.u32 %s322, 4
          %s330 = int_to_ptr.vmem [resolvable:$true] %s329
          %335 = dma.hbm_to_vmem [thread:$0]  %s328, 2048, %s330, %s319, 128, 128, 8
        $region44: #{tpu_custom_call.1} parent=39 // pred_fallthru
          _
      $region40: #{tpu_custom_call.1} parent=5 // pred_fallthru
        _
      %p336 = scmp.le.s32.totalorder 1, %s25
      %p337 = scmp.lt.s32.totalorder %s25, 3
      %p338 = pnand %p336, %p337
      %p339 = pneg %p338
      // Predicated region
      $region45: #{tpu_custom_call.1} parent=5 // pred_check
        _
      $region46: #{tpu_custom_call.1} parent=5 // pred_check_branch
        %341 = sbr.rel (%p338) target = $region48
      $region47: #{tpu_custom_call.1} parent=5 // pred_region
        %s342 = ssub.s32 %s25, 1
        // Predicated region
        $region49: #{tpu_custom_call.1} parent=47 // pred_check
          %p343 = pneg %p46
        $region50: #{tpu_custom_call.1} parent=47 // pred_check_branch
          %345 = sbr.rel (%p343) target = $region52
        $region51: #{tpu_custom_call.1} parent=47 // pred_region
          %346 = dma.done [#allocation10], 16
        $region52: #{tpu_custom_call.1} parent=47 // pred_fallthru
          _
        // Predicated region
        $region53: #{tpu_custom_call.1} parent=47 // pred_check
          %p347 = pneg %p67
        $region54: #{tpu_custom_call.1} parent=47 // pred_check_branch
          %349 = sbr.rel (%p347) target = $region56
        $region55: #{tpu_custom_call.1} parent=47 // pred_region
          %350 = dma.done [#allocation8], 256
        $region56: #{tpu_custom_call.1} parent=47 // pred_fallthru
          _
        // Predicated region
        $region57: #{tpu_custom_call.1} parent=47 // pred_check
          %p351 = pneg %p88
        $region58: #{tpu_custom_call.1} parent=47 // pred_check_branch
          %353 = sbr.rel (%p351) target = $region60
        $region59: #{tpu_custom_call.1} parent=47 // pred_region
          %354 = dma.done [#allocation13], 256
        $region60: #{tpu_custom_call.1} parent=47 // pred_fallthru
          _
        // Predicated region
        $region61: #{tpu_custom_call.1} parent=47 // pred_check
          %p355 = pneg %p109
        $region62: #{tpu_custom_call.1} parent=47 // pred_check_branch
          %357 = sbr.rel (%p355) target = $region64
        $region63: #{tpu_custom_call.1} parent=47 // pred_region
          %358 = dma.done [#allocation13], 16384
        $region64: #{tpu_custom_call.1} parent=47 // pred_fallthru
          _
        %s359 = sand.u32 %s143, 1
        %s360 = scalar_lea.sflag [#allocation16], %s359
        %s361 = sand.u32 %s143, 1
        %s362 = smul.addr %s361, 128
        %s363 = scalar_lea.vmem [#allocation15], %s362
        // Predicated region
        $region65: #{tpu_custom_call.1} parent=47 // pred_check
          %p364 = pneg %p156
        $region66: #{tpu_custom_call.1} parent=47 // pred_check_branch
          %366 = sbr.rel (%p364) target = $region68
        $region67: #{tpu_custom_call.1} parent=47 // pred_region
          %367 = dma.done %s360, 2048
        $region68: #{tpu_custom_call.1} parent=47 // pred_fallthru
          _
        %368 = sfence
        %p369 = pneg %p46
        %p370 = pneg %p43
        %p371 = pneg %p67
        %p372 = pneg %p64
        %p373 = pneg %p88
        %p374 = pneg %p85
        %p375 = pneg %p109
        %p376 = pneg %p106
        %p377 = pneg %p130
        %p378 = pneg %p127
        %s379 = sand.u32 %s143, 1
        %s380 = scalar_lea.sflag [#allocation16], %s379
        %s381 = sand.u32 %s143, 1
        %s382 = smul.addr %s381, 128
        %s383 = scalar_lea.vmem [#allocation15], %s382
        %p384 = pneg %p156
        %p385 = pneg %p153
        %p386 = pneg %p177
        %p387 = pneg %p174
        %p388 = pneg %p198
        %p389 = pneg %p195
        %p390 = pneg %p219
        %p391 = pneg %p216
        %p392 = pneg %p240
        %p393 = pneg %p237
        %p395 = scmp.eq.s32.totalorder %s30, 0
        // Predicated region
        $region69: #{tpu_custom_call.1} parent=47 // pred_check
          %p396 = pneg %p395
        $region70: #{tpu_custom_call.1} parent=47 // pred_check_branch
          %398 = sbr.rel (%p396) target = $region72
        $region71: #{tpu_custom_call.1} parent=47 // pred_region
          %s399 = sld [smem:[#allocation7]]
          %p400 = scmp.gt.s32.totalorder %s399, 0
          %s401 = scalar_select %p400, %s399, 0
          %p402 = scmp.lt.s32.totalorder %s401, 511
          %s403 = scalar_select %p402, %s401, 511
          %s404 = smul.addr %s403, 16
          %s405 = scalar_lea.hbm %s1, %s404
          // Predicated region
          $region73: #{tpu_custom_call.1} parent=71 // pred_check
            _
          $region74: #{tpu_custom_call.1} parent=71 // pred_check_branch
            %407 = sbr.rel target = $region76
          $region75: #{tpu_custom_call.1} parent=71 // pred_region
            %408 = sst [smem:[#allocation23]] [#allocation22]
            %409 = sst [smem:[#allocation24]] [#allocation21]
          $region76: #{tpu_custom_call.1} parent=71 // pred_fallthru
            _
          %411 = shalt.err (0)
          %s413 = sshll.u32 [#allocation3], 4
          %s414 = int_to_ptr.vmem [resolvable:$true] %s413
          %416 = dma.hbm_to_vmem [thread:$0]  %s405, 16, %s414, [#allocation6]
          %s417 = sld [smem:[#allocation7 + $0x1]]
          %p418 = scmp.gt.s32.totalorder %s417, 0
          %s419 = scalar_select %p418, %s417, 0
          %p420 = scmp.lt.s32.totalorder %s419, 511
          %s421 = scalar_select %p420, %s419, 511
          %s422 = smul.addr %s421, 16
          %s423 = scalar_lea.hbm %s1, %s422
          %s424 = scalar_lea.vmem [#allocation3], 1
          %s425 = scalar_lea.sflag [#allocation6], 1
          // Predicated region
          $region77: #{tpu_custom_call.1} parent=71 // pred_check
            _
          $region78: #{tpu_custom_call.1} parent=71 // pred_check_branch
            %427 = sbr.rel target = $region80
          $region79: #{tpu_custom_call.1} parent=71 // pred_region
            %428 = sst [smem:[#allocation23]] [#allocation26]
            %429 = sst [smem:[#allocation24]] [#allocation25]
          $region80: #{tpu_custom_call.1} parent=71 // pred_fallthru
            _
          %431 = shalt.err (0)
          %s433 = sshll.u32 %s424, 4
          %s434 = int_to_ptr.vmem [resolvable:$true] %s433
          %436 = dma.hbm_to_vmem [thread:$0]  %s423, 16, %s434, %s425
          %s437 = sld [smem:[#allocation7 + $0x2]]
          %p438 = scmp.gt.s32.totalorder %s437, 0
          %s439 = scalar_select %p438, %s437, 0
          %p440 = scmp.lt.s32.totalorder %s439, 511
          %s441 = scalar_select %p440, %s439, 511
          %s442 = smul.addr %s441, 16
          %s443 = scalar_lea.hbm %s1, %s442
          %s444 = scalar_lea.vmem [#allocation3], 2
          %s445 = scalar_lea.sflag [#allocation6], 2
          // Predicated region
          $region81: #{tpu_custom_call.1} parent=71 // pred_check
            _
          $region82: #{tpu_custom_call.1} parent=71 // pred_check_branch
            %447 = sbr.rel target = $region84
          $region83: #{tpu_custom_call.1} parent=71 // pred_region
            %448 = sst [smem:[#allocation23]] [#allocation28]
            %449 = sst [smem:[#allocation24]] [#allocation27]
          $region84: #{tpu_custom_call.1} parent=71 // pred_fallthru
            _
          %451 = shalt.err (0)
          %s453 = sshll.u32 %s444, 4
          %s454 = int_to_ptr.vmem [resolvable:$true] %s453
          %456 = dma.hbm_to_vmem [thread:$0]  %s443, 16, %s454, %s445
          %s457 = sld [smem:[#allocation7 + $0x3]]
          %p458 = scmp.gt.s32.totalorder %s457, 0
          %s459 = scalar_select %p458, %s457, 0
          %p460 = scmp.lt.s32.totalorder %s459, 511
          %s461 = scalar_select %p460, %s459, 511
          %s462 = smul.addr %s461, 16
          %s463 = scalar_lea.hbm %s1, %s462
          %s464 = scalar_lea.vmem [#allocation3], 3
          %s465 = scalar_lea.sflag [#allocation6], 3
          // Predicated region
          $region85: #{tpu_custom_call.1} parent=71 // pred_check
            _
          $region86: #{tpu_custom_call.1} parent=71 // pred_check_branch
            %467 = sbr.rel target = $region88
          $region87: #{tpu_custom_call.1} parent=71 // pred_region
            %468 = sst [smem:[#allocation23]] [#allocation30]
            %469 = sst [smem:[#allocation24]] [#allocation29]
          $region88: #{tpu_custom_call.1} parent=71 // pred_fallthru
            _
          %471 = shalt.err (0)
          %s473 = sshll.u32 %s464, 4
          %s474 = int_to_ptr.vmem [resolvable:$true] %s473
          %476 = dma.hbm_to_vmem [thread:$0]  %s463, 16, %s474, %s465
          %s477 = sld [smem:[#allocation7 + $0x4]]
          %p478 = scmp.gt.s32.totalorder %s477, 0
          %s479 = scalar_select %p478, %s477, 0
          %p480 = scmp.lt.s32.totalorder %s479, 511
          %s481 = scalar_select %p480, %s479, 511
          %s482 = smul.addr %s481, 16
          %s483 = scalar_lea.hbm %s1, %s482
          %s484 = scalar_lea.vmem [#allocation3], 4
          %s485 = scalar_lea.sflag [#allocation6], 4
          // Predicated region
          $region89: #{tpu_custom_call.1} parent=71 // pred_check
            _
          $region90: #{tpu_custom_call.1} parent=71 // pred_check_branch
            %487 = sbr.rel target = $region92
          $region91: #{tpu_custom_call.1} parent=71 // pred_region
            %488 = sst [smem:[#allocation23]] [#allocation32]
            %489 = sst [smem:[#allocation24]] [#allocation31]
          $region92: #{tpu_custom_call.1} parent=71 // pred_fallthru
            _
          %491 = shalt.err (0)
          %s493 = sshll.u32 %s484, 4
          %s494 = int_to_ptr.vmem [resolvable:$true] %s493
          %496 = dma.hbm_to_vmem [thread:$0]  %s483, 16, %s494, %s485
          %s497 = sld [smem:[#allocation7 + $0x5]]
          %p498 = scmp.gt.s32.totalorder %s497, 0
          %s499 = scalar_select %p498, %s497, 0
          %p500 = scmp.lt.s32.totalorder %s499, 511
          %s501 = scalar_select %p500, %s499, 511
          %s502 = smul.addr %s501, 16
          %s503 = scalar_lea.hbm %s1, %s502
          %s504 = scalar_lea.vmem [#allocation3], 5
          %s505 = scalar_lea.sflag [#allocation6], 5
          // Predicated region
          $region93: #{tpu_custom_call.1} parent=71 // pred_check
            _
          $region94: #{tpu_custom_call.1} parent=71 // pred_check_branch
            %507 = sbr.rel target = $region96
          $region95: #{tpu_custom_call.1} parent=71 // pred_region
            %508 = sst [smem:[#allocation23]] [#allocation34]
            %509 = sst [smem:[#allocation24]] [#allocation33]
          $region96: #{tpu_custom_call.1} parent=71 // pred_fallthru
            _
          %511 = shalt.err (0)
          %s513 = sshll.u32 %s504, 4
          %s514 = int_to_ptr.vmem [resolvable:$true] %s513
          %516 = dma.hbm_to_vmem [thread:$0]  %s503, 16, %s514, %s505
          %s517 = sld [smem:[#allocation7 + $0x6]]
          %p518 = scmp.gt.s32.totalorder %s517, 0
          %s519 = scalar_select %p518, %s517, 0
          %p520 = scmp.lt.s32.totalorder %s519, 511
          %s521 = scalar_select %p520, %s519, 511
          %s522 = smul.addr %s521, 16
          %s523 = scalar_lea.hbm %s1, %s522
          %s524 = scalar_lea.vmem [#allocation3], 6
          %s525 = scalar_lea.sflag [#allocation6], 6
          // Predicated region
          $region97: #{tpu_custom_call.1} parent=71 // pred_check
            _
          $region98: #{tpu_custom_call.1} parent=71 // pred_check_branch
            %527 = sbr.rel target = $region100
          $region99: #{tpu_custom_call.1} parent=71 // pred_region
            %528 = sst [smem:[#allocation23]] [#allocation36]
            %529 = sst [smem:[#allocation24]] [#allocation35]
          $region100: #{tpu_custom_call.1} parent=71 // pred_fallthru
            _
          %531 = shalt.err (0)
          %s533 = sshll.u32 %s524, 4
          %s534 = int_to_ptr.vmem [resolvable:$true] %s533
          %536 = dma.hbm_to_vmem [thread:$0]  %s523, 16, %s534, %s525
          %s537 = sld [smem:[#allocation7 + $0x7]]
          %p538 = scmp.gt.s32.totalorder %s537, 0
          %s539 = scalar_select %p538, %s537, 0
          %p540 = scmp.lt.s32.totalorder %s539, 511
          %s541 = scalar_select %p540, %s539, 511
          %s542 = smul.addr %s541, 16
          %s543 = scalar_lea.hbm %s1, %s542
          %s544 = scalar_lea.vmem [#allocation3], 7
          %s545 = scalar_lea.sflag [#allocation6], 7
          // Predicated region
          $region101: #{tpu_custom_call.1} parent=71 // pred_check
            _
          $region102: #{tpu_custom_call.1} parent=71 // pred_check_branch
            %547 = sbr.rel target = $region104
          $region103: #{tpu_custom_call.1} parent=71 // pred_region
            %548 = sst [smem:[#allocation23]] [#allocation38]
            %549 = sst [smem:[#allocation24]] [#allocation37]
          $region104: #{tpu_custom_call.1} parent=71 // pred_fallthru
            _
          %551 = shalt.err (0)
          %s553 = sshll.u32 %s544, 4
          %s554 = int_to_ptr.vmem [resolvable:$true] %s553
          %556 = dma.hbm_to_vmem [thread:$0]  %s543, 16, %s554, %s545
          %vm557 = vcmask 7168
          %558 = vst.msk [vmem:[#allocation4] sm:$0xff] %vm557, -inf
          %559 = vst.msk [vmem:[#allocation5] sm:$0xff] %vm557, 0.0
          %v560 = vld [vmem:[#allocation11] sm:$0xff]
          %v561 = vld [vmem:[#allocation12] sm:$0xff]
          %v562 = vpack.c.bf16 %v560, %v560
          %v563 = vld [vmem:[#allocation14 + $0x100] sm:$0xff]
          %v564 = vld [vmem:[#allocation14 + $0x108] sm:$0xff]
          %v565 = vld [vmem:[#allocation14 + $0x110] sm:$0xff]
          %v566 = vld [vmem:[#allocation14 + $0x118] sm:$0xff]
          %v567 = vld [vmem:[#allocation14 + $0x120] sm:$0xff]
          %v568 = vld [vmem:[#allocation14 + $0x128] sm:$0xff]
          %v569 = vld [vmem:[#allocation14 + $0x130] sm:$0xff]
          %v570 = vld [vmem:[#allocation14 + $0x138] sm:$0xff]
          %v571 = vld [vmem:[#allocation14 + $0x140] sm:$0xff]
          %v572 = vld [vmem:[#allocation14 + $0x148] sm:$0xff]
          %v573 = vld [vmem:[#allocation14 + $0x150] sm:$0xff]
          %v574 = vld [vmem:[#allocation14 + $0x158] sm:$0xff]
          %v575 = vld [vmem:[#allocation14 + $0x160] sm:$0xff]
          %v576 = vld [vmem:[#allocation14 + $0x168] sm:$0xff]
          %v577 = vld [vmem:[#allocation14 + $0x170] sm:$0xff]
          %v578 = vld [vmem:[#allocation14 + $0x178] sm:$0xff]
          %v579 = vld [vmem:[#allocation14 + $0x180] sm:$0xff]
          %v580 = vld [vmem:[#allocation14 + $0x188] sm:$0xff]
          %v581 = vld [vmem:[#allocation14 + $0x190] sm:$0xff]
          %v582 = vld [vmem:[#allocation14 + $0x198] sm:$0xff]
          %v583 = vld [vmem:[#allocation14 + $0x1a0] sm:$0xff]
          %v584 = vld [vmem:[#allocation14 + $0x1a8] sm:$0xff]
          %v585 = vld [vmem:[#allocation14 + $0x1b0] sm:$0xff]
          %v586 = vld [vmem:[#allocation14 + $0x1b8] sm:$0xff]
          %v587 = vld [vmem:[#allocation14 + $0x1c0] sm:$0xff]
          %v588 = vld [vmem:[#allocation14 + $0x1c8] sm:$0xff]
          %v589 = vld [vmem:[#allocation14 + $0x1d0] sm:$0xff]
          %v590 = vld [vmem:[#allocation14 + $0x1d8] sm:$0xff]
          %v591 = vld [vmem:[#allocation14 + $0x1e0] sm:$0xff]
          %v592 = vld [vmem:[#allocation14 + $0x1e8] sm:$0xff]
          %v593 = vld [vmem:[#allocation14 + $0x1f0] sm:$0xff]
          %v594 = vld [vmem:[#allocation14 + $0x1f8] sm:$0xff]
          %s595 = smul.u32 1, 1
          %s596 = sshll.u32 %s595, 4
          %597 = dma.done [#allocation6], %s596
          %s598 = sshll.u32 %s595, 4
          %599 = dma.done %s425, %s598
          %s600 = sshll.u32 %s595, 4
          %601 = dma.done %s445, %s600
          %s602 = sshll.u32 %s595, 4
          %603 = dma.done %s465, %s602
          %s604 = sshll.u32 %s595, 4
          %605 = dma.done %s485, %s604
          %s606 = sshll.u32 %s595, 4
          %607 = dma.done %s505, %s606
          %s608 = sshll.u32 %s595, 4
          %609 = dma.done %s525, %s608
          %s610 = sshll.u32 %s595, 4
          %611 = dma.done %s545, %s610
          %v612 = vld [vmem:[#allocation3] sm:$0xff]
          %v613 = vpack.c.bf16 %v612, %v612
          %v614 = vld [vmem:[#allocation14] sm:$0xff]
          %v615 = vld [vmem:[#allocation14 + $0x8] sm:$0xff]
          %v616 = vld [vmem:[#allocation14 + $0x10] sm:$0xff]
          %v617 = vld [vmem:[#allocation14 + $0x18] sm:$0xff]
          %v618 = vld [vmem:[#allocation14 + $0x20] sm:$0xff]
          %v619 = vld [vmem:[#allocation14 + $0x28] sm:$0xff]
          %v620 = vld [vmem:[#allocation14 + $0x30] sm:$0xff]
          %v621 = vld [vmem:[#allocation14 + $0x38] sm:$0xff]
          %v622 = vld [vmem:[#allocation14 + $0x40] sm:$0xff]
          %v623 = vld [vmem:[#allocation14 + $0x48] sm:$0xff]
          %v624 = vld [vmem:[#allocation14 + $0x50] sm:$0xff]
          %v625 = vld [vmem:[#allocation14 + $0x58] sm:$0xff]
          %v626 = vld [vmem:[#allocation14 + $0x60] sm:$0xff]
          %v627 = vld [vmem:[#allocation14 + $0x68] sm:$0xff]
          %v628 = vld [vmem:[#allocation14 + $0x70] sm:$0xff]
          %v629 = vld [vmem:[#allocation14 + $0x78] sm:$0xff]
          %v630 = vld [vmem:[#allocation14 + $0x80] sm:$0xff]
          %v631 = vld [vmem:[#allocation14 + $0x88] sm:$0xff]
          %v632 = vld [vmem:[#allocation14 + $0x90] sm:$0xff]
          %v633 = vld [vmem:[#allocation14 + $0x98] sm:$0xff]
          %v634 = vld [vmem:[#allocation14 + $0xa0] sm:$0xff]
          %v635 = vld [vmem:[#allocation14 + $0xa8] sm:$0xff]
          %v636 = vld [vmem:[#allocation14 + $0xb0] sm:$0xff]
          %v637 = vld [vmem:[#allocation14 + $0xb8] sm:$0xff]
          %v638 = vld [vmem:[#allocation14 + $0xc0] sm:$0xff]
          %v639 = vld [vmem:[#allocation14 + $0xc8] sm:$0xff]
          %v640 = vld [vmem:[#allocation14 + $0xd0] sm:$0xff]
          %v641 = vld [vmem:[#allocation14 + $0xd8] sm:$0xff]
          %v642 = vld [vmem:[#allocation14 + $0xe0] sm:$0xff]
          %v643 = vld [vmem:[#allocation14 + $0xe8] sm:$0xff]
          %v644 = vld [vmem:[#allocation14 + $0xf0] sm:$0xff]
          %v645 = vld [vmem:[#allocation14 + $0xf8] sm:$0xff]
          %v678 = vunpack.c.l.b16 %v614
          %v679 = vunpack.c.h.b16 %v614
          %v680 = vunpack.c.l.b16 %v615
          %v681 = vunpack.c.h.b16 %v615
          %v682 = vunpack.c.l.b16 %v616
          %v683 = vunpack.c.h.b16 %v616
          %v684 = vunpack.c.l.b16 %v617
          %v685 = vunpack.c.h.b16 %v617
          %v686 = vunpack.c.l.b16 %v618
          %v687 = vunpack.c.h.b16 %v618
          %v688 = vunpack.c.l.b16 %v619
          %v689 = vunpack.c.h.b16 %v619
          %v690 = vunpack.c.l.b16 %v620
          %v691 = vunpack.c.h.b16 %v620
          %v692 = vunpack.c.l.b16 %v621
          %v693 = vunpack.c.h.b16 %v621
          %v694 = vunpack.c.l.b16 %v622
          %v695 = vunpack.c.h.b16 %v622
          %v696 = vunpack.c.l.b16 %v623
          %v697 = vunpack.c.h.b16 %v623
          %v698 = vunpack.c.l.b16 %v624
          %v699 = vunpack.c.h.b16 %v624
          %v700 = vunpack.c.l.b16 %v625
          %v701 = vunpack.c.h.b16 %v625
          %v702 = vunpack.c.l.b16 %v626
          %v703 = vunpack.c.h.b16 %v626
          %v704 = vunpack.c.l.b16 %v627
          %v705 = vunpack.c.h.b16 %v627
          %v706 = vunpack.c.l.b16 %v628
          %v707 = vunpack.c.h.b16 %v628
          %v708 = vunpack.c.l.b16 %v629
          %v709 = vunpack.c.h.b16 %v629
          %v710 = vunpack.c.l.b16 %v630
          %v711 = vunpack.c.h.b16 %v630
          %v712 = vunpack.c.l.b16 %v631
          %v713 = vunpack.c.h.b16 %v631
          %v714 = vunpack.c.l.b16 %v632
          %v715 = vunpack.c.h.b16 %v632
          %v716 = vunpack.c.l.b16 %v633
          %v717 = vunpack.c.h.b16 %v633
          %v718 = vunpack.c.l.b16 %v634
          %v719 = vunpack.c.h.b16 %v634
          %v720 = vunpack.c.l.b16 %v635
          %v721 = vunpack.c.h.b16 %v635
          %v722 = vunpack.c.l.b16 %v636
          %v723 = vunpack.c.h.b16 %v636
          %v724 = vunpack.c.l.b16 %v637
          %v725 = vunpack.c.h.b16 %v637
          %v726 = vunpack.c.l.b16 %v638
          %v727 = vunpack.c.h.b16 %v638
          %v728 = vunpack.c.l.b16 %v639
          %v729 = vunpack.c.h.b16 %v639
          %v730 = vunpack.c.l.b16 %v640
          %v731 = vunpack.c.h.b16 %v640
          %v732 = vunpack.c.l.b16 %v641
          %v733 = vunpack.c.h.b16 %v641
          %v734 = vunpack.c.l.b16 %v642
          %v735 = vunpack.c.h.b16 %v642
          %v736 = vunpack.c.l.b16 %v643
          %v737 = vunpack.c.h.b16 %v643
          %v738 = vunpack.c.l.b16 %v644
          %v739 = vunpack.c.h.b16 %v644
          %v740 = vunpack.c.l.b16 %v645
          %v741 = vunpack.c.h.b16 %v645
          %v742 = vpack.c.b16 %v682, %v678
          %v743 = vpack.c.b16 %v683, %v679
          %v744 = vpack.c.b16 %v684, %v680
          %v745 = vpack.c.b16 %v685, %v681
          %v746 = vpack.c.b16 %v690, %v686
          %v747 = vpack.c.b16 %v691, %v687
          %v748 = vpack.c.b16 %v692, %v688
          %v749 = vpack.c.b16 %v693, %v689
          %v750 = vpack.c.b16 %v698, %v694
          %v751 = vpack.c.b16 %v699, %v695
          %v752 = vpack.c.b16 %v700, %v696
          %v753 = vpack.c.b16 %v701, %v697
          %v754 = vpack.c.b16 %v706, %v702
          %v755 = vpack.c.b16 %v707, %v703
          %v756 = vpack.c.b16 %v708, %v704
          %v757 = vpack.c.b16 %v709, %v705
          %v758 = vpack.c.b16 %v714, %v710
          %v759 = vpack.c.b16 %v715, %v711
          %v760 = vpack.c.b16 %v716, %v712
          %v761 = vpack.c.b16 %v717, %v713
          %v762 = vpack.c.b16 %v722, %v718
          %v763 = vpack.c.b16 %v723, %v719
          %v764 = vpack.c.b16 %v724, %v720
          %v765 = vpack.c.b16 %v725, %v721
          %v766 = vpack.c.b16 %v730, %v726
          %v767 = vpack.c.b16 %v731, %v727
          %v768 = vpack.c.b16 %v732, %v728
          %v769 = vpack.c.b16 %v733, %v729
          %v770 = vpack.c.b16 %v738, %v734
          %v771 = vpack.c.b16 %v739, %v735
          %v772 = vpack.c.b16 %v740, %v736
          %v773 = vpack.c.b16 %v741, %v737
          %806 = vmatprep.subr.bf16.mxu0 %v771
          %807 = vmatpush1.bf16.msra.mxu0 %v770
          %808 = vmatprep.subr.bf16.mxu0 %v767
          %809 = vmatpush1.bf16.msra.mxu0 %v766
          %810 = vmatprep.subr.bf16.mxu0 %v763
          %811 = vmatpush1.bf16.msra.mxu0 %v762
          %812 = vmatprep.subr.bf16.mxu0 %v759
          %813 = vmatpush1.bf16.msra.mxu0 %v758
          %814 = vmatprep.subr.bf16.mxu0 %v755
          %815 = vmatpush1.bf16.msra.mxu0 %v754
          %816 = vmatprep.subr.bf16.mxu0 %v751
          %817 = vmatpush1.bf16.msra.mxu0 %v750
          %818 = vmatprep.subr.bf16.mxu0 %v747
          %819 = vmatpush1.bf16.msra.mxu0 %v746
          %820 = vmatprep.subr.bf16.mxu0 %v743
          %821 = vmatpush1.bf16.msra.mxu0 %v742
          %822 = vmatprep.subr.bf16.mxu0 0
          %823 = vmatpush2.bf16.msra.mxu0 0
          %824 = vmatprep.subr.bf16.mxu0 0
          %825 = vmatpush2.bf16.msra.mxu0 0
          %826 = vmatprep.subr.bf16.mxu0 0
          %827 = vmatpush2.bf16.msra.mxu0 0
          %828 = vmatprep.subr.bf16.mxu0 0
          %829 = vmatpush2.bf16.msra.mxu0 0
          %830 = vmatprep.subr.bf16.mxu0 0
          %831 = vmatpush2.bf16.msra.mxu0 0
          %832 = vmatprep.subr.bf16.mxu0 0
          %833 = vmatpush2.bf16.msra.mxu0 0
          %834 = vmatprep.subr.bf16.mxu0 0
          %835 = vmatpush2.bf16.msra.mxu0 0
          %836 = vmatprep.subr.bf16.mxu0 0
          %837 = vmatpush2.bf16.msra.mxu0 0
          %838 = vmatprep.mubr.bf16.mxu0 0
          %839 = vmatmul.mubr.bf16.gmra.mxu0 %v613
          %v840 = vpop.f32.mrf.mxu0
          %v841 = vadd.f32 0.0, %v840
          %v842 = vpop.f32.mrf.mxu0
          %v843 = vadd.f32 0.0, %v842
          %v844 = vpop.f32.mrf.mxu0
          %v845 = vpop.f32.mrf.mxu0
          %846 = vdwg.mxu0
          %847 = vmatprep.subr.bf16.mxu0 %v773
          %848 = vmatpush1.bf16.msra.mxu0 %v772
          %849 = vmatprep.subr.bf16.mxu0 %v769
          %850 = vmatpush1.bf16.msra.mxu0 %v768
          %851 = vmatprep.subr.bf16.mxu0 %v765
          %852 = vmatpush1.bf16.msra.mxu0 %v764
          %853 = vmatprep.subr.bf16.mxu0 %v761
          %854 = vmatpush1.bf16.msra.mxu0 %v760
          %855 = vmatprep.subr.bf16.mxu0 %v757
          %856 = vmatpush1.bf16.msra.mxu0 %v756
          %857 = vmatprep.subr.bf16.mxu0 %v753
          %858 = vmatpush1.bf16.msra.mxu0 %v752
          %859 = vmatprep.subr.bf16.mxu0 %v749
          %860 = vmatpush1.bf16.msra.mxu0 %v748
          %861 = vmatprep.subr.bf16.mxu0 %v745
          %862 = vmatpush1.bf16.msra.mxu0 %v744
          %863 = vmatprep.subr.bf16.mxu0 0
          %864 = vmatpush2.bf16.msra.mxu0 0
          %865 = vmatprep.subr.bf16.mxu0 0
          %866 = vmatpush2.bf16.msra.mxu0 0
          %867 = vmatprep.subr.bf16.mxu0 0
          %868 = vmatpush2.bf16.msra.mxu0 0
          %869 = vmatprep.subr.bf16.mxu0 0
          %870 = vmatpush2.bf16.msra.mxu0 0
          %871 = vmatprep.subr.bf16.mxu0 0
          %872 = vmatpush2.bf16.msra.mxu0 0
          %873 = vmatprep.subr.bf16.mxu0 0
          %874 = vmatpush2.bf16.msra.mxu0 0
          %875 = vmatprep.subr.bf16.mxu0 0
          %876 = vmatpush2.bf16.msra.mxu0 0
          %877 = vmatprep.subr.bf16.mxu0 0
          %878 = vmatpush2.bf16.msra.mxu0 0
          %879 = vmatprep.mubr.bf16.mxu0 0
          %880 = vmatmul.mubr.bf16.gmra.mxu0 %v613
          %v881 = vpop.f32.mrf.mxu0
          %v882 = vadd.f32 0.0, %v881
          %v883 = vpop.f32.mrf.mxu0
          %v884 = vadd.f32 0.0, %v883
          %v885 = vpop.f32.mrf.mxu0
          %v886 = vpop.f32.mrf.mxu0
          %887 = vdwg.mxu0
          %v920 = vunpack.c.l.b16 %v563
          %v921 = vunpack.c.h.b16 %v563
          %v922 = vunpack.c.l.b16 %v564
          %v923 = vunpack.c.h.b16 %v564
          %v924 = vunpack.c.l.b16 %v565
          %v925 = vunpack.c.h.b16 %v565
          %v926 = vunpack.c.l.b16 %v566
          %v927 = vunpack.c.h.b16 %v566
          %v928 = vunpack.c.l.b16 %v567
          %v929 = vunpack.c.h.b16 %v567
          %v930 = vunpack.c.l.b16 %v568
          %v931 = vunpack.c.h.b16 %v568
          %v932 = vunpack.c.l.b16 %v569
          %v933 = vunpack.c.h.b16 %v569
          %v934 = vunpack.c.l.b16 %v570
          %v935 = vunpack.c.h.b16 %v570
          %v936 = vunpack.c.l.b16 %v571
          %v937 = vunpack.c.h.b16 %v571
          %v938 = vunpack.c.l.b16 %v572
          %v939 = vunpack.c.h.b16 %v572
          %v940 = vunpack.c.l.b16 %v573
          %v941 = vunpack.c.h.b16 %v573
          %v942 = vunpack.c.l.b16 %v574
          %v943 = vunpack.c.h.b16 %v574
          %v944 = vunpack.c.l.b16 %v575
          %v945 = vunpack.c.h.b16 %v575
          %v946 = vunpack.c.l.b16 %v576
          %v947 = vunpack.c.h.b16 %v576
          %v948 = vunpack.c.l.b16 %v577
          %v949 = vunpack.c.h.b16 %v577
          %v950 = vunpack.c.l.b16 %v578
          %v951 = vunpack.c.h.b16 %v578
          %v952 = vunpack.c.l.b16 %v579
          %v953 = vunpack.c.h.b16 %v579
          %v954 = vunpack.c.l.b16 %v580
          %v955 = vunpack.c.h.b16 %v580
          %v956 = vunpack.c.l.b16 %v581
          %v957 = vunpack.c.h.b16 %v581
          %v958 = vunpack.c.l.b16 %v582
          %v959 = vunpack.c.h.b16 %v582
          %v960 = vunpack.c.l.b16 %v583
          %v961 = vunpack.c.h.b16 %v583
          %v962 = vunpack.c.l.b16 %v584
          %v963 = vunpack.c.h.b16 %v584
          %v964 = vunpack.c.l.b16 %v585
          %v965 = vunpack.c.h.b16 %v585
          %v966 = vunpack.c.l.b16 %v586
          %v967 = vunpack.c.h.b16 %v586
          %v968 = vunpack.c.l.b16 %v587
          %v969 = vunpack.c.h.b16 %v587
          %v970 = vunpack.c.l.b16 %v588
          %v971 = vunpack.c.h.b16 %v588
          %v972 = vunpack.c.l.b16 %v589
          %v973 = vunpack.c.h.b16 %v589
          %v974 = vunpack.c.l.b16 %v590
          %v975 = vunpack.c.h.b16 %v590
          %v976 = vunpack.c.l.b16 %v591
          %v977 = vunpack.c.h.b16 %v591
          %v978 = vunpack.c.l.b16 %v592
          %v979 = vunpack.c.h.b16 %v592
          %v980 = vunpack.c.l.b16 %v593
          %v981 = vunpack.c.h.b16 %v593
          %v982 = vunpack.c.l.b16 %v594
          %v983 = vunpack.c.h.b16 %v594
          %v984 = vpack.c.b16 %v924, %v920
          %v985 = vpack.c.b16 %v925, %v921
          %v986 = vpack.c.b16 %v926, %v922
          %v987 = vpack.c.b16 %v927, %v923
          %v988 = vpack.c.b16 %v932, %v928
          %v989 = vpack.c.b16 %v933, %v929
          %v990 = vpack.c.b16 %v934, %v930
          %v991 = vpack.c.b16 %v935, %v931
          %v992 = vpack.c.b16 %v940, %v936
          %v993 = vpack.c.b16 %v941, %v937
          %v994 = vpack.c.b16 %v942, %v938
          %v995 = vpack.c.b16 %v943, %v939
          %v996 = vpack.c.b16 %v948, %v944
          %v997 = vpack.c.b16 %v949, %v945
          %v998 = vpack.c.b16 %v950, %v946
          %v999 = vpack.c.b16 %v951, %v947
          %v1000 = vpack.c.b16 %v956, %v952
          %v1001 = vpack.c.b16 %v957, %v953
          %v1002 = vpack.c.b16 %v958, %v954
          %v1003 = vpack.c.b16 %v959, %v955
          %v1004 = vpack.c.b16 %v964, %v960
          %v1005 = vpack.c.b16 %v965, %v961
          %v1006 = vpack.c.b16 %v966, %v962
          %v1007 = vpack.c.b16 %v967, %v963
          %v1008 = vpack.c.b16 %v972, %v968
          %v1009 = vpack.c.b16 %v973, %v969
          %v1010 = vpack.c.b16 %v974, %v970
          %v1011 = vpack.c.b16 %v975, %v971
          %v1012 = vpack.c.b16 %v980, %v976
          %v1013 = vpack.c.b16 %v981, %v977
          %v1014 = vpack.c.b16 %v982, %v978
          %v1015 = vpack.c.b16 %v983, %v979
          %1048 = vmatprep.subr.bf16.mxu0 %v1013
          %1049 = vmatpush1.bf16.msra.mxu0 %v1012
          %1050 = vmatprep.subr.bf16.mxu0 %v1009
          %1051 = vmatpush1.bf16.msra.mxu0 %v1008
          %1052 = vmatprep.subr.bf16.mxu0 %v1005
          %1053 = vmatpush1.bf16.msra.mxu0 %v1004
          %1054 = vmatprep.subr.bf16.mxu0 %v1001
          %1055 = vmatpush1.bf16.msra.mxu0 %v1000
          %1056 = vmatprep.subr.bf16.mxu0 %v997
          %1057 = vmatpush1.bf16.msra.mxu0 %v996
          %1058 = vmatprep.subr.bf16.mxu0 %v993
          %1059 = vmatpush1.bf16.msra.mxu0 %v992
          %1060 = vmatprep.subr.bf16.mxu0 %v989
          %1061 = vmatpush1.bf16.msra.mxu0 %v988
          %1062 = vmatprep.subr.bf16.mxu0 %v985
          %1063 = vmatpush1.bf16.msra.mxu0 %v984
          %1064 = vmatprep.subr.bf16.mxu0 0
          %1065 = vmatpush2.bf16.msra.mxu0 0
          %1066 = vmatprep.subr.bf16.mxu0 0
          %1067 = vmatpush2.bf16.msra.mxu0 0
          %1068 = vmatprep.subr.bf16.mxu0 0
          %1069 = vmatpush2.bf16.msra.mxu0 0
          %1070 = vmatprep.subr.bf16.mxu0 0
          %1071 = vmatpush2.bf16.msra.mxu0 0
          %1072 = vmatprep.subr.bf16.mxu0 0
          %1073 = vmatpush2.bf16.msra.mxu0 0
          %1074 = vmatprep.subr.bf16.mxu0 0
          %1075 = vmatpush2.bf16.msra.mxu0 0
          %1076 = vmatprep.subr.bf16.mxu0 0
          %1077 = vmatpush2.bf16.msra.mxu0 0
          %1078 = vmatprep.subr.bf16.mxu0 0
          %1079 = vmatpush2.bf16.msra.mxu0 0
          %1080 = vmatprep.mubr.bf16.mxu0 0
          %1081 = vmatmul.mubr.bf16.gmra.mxu0 %v562
          %v1082 = vpop.f32.mrf.mxu0
          %v1083 = vadd.f32 %v841, %v1082
          %v1084 = vpop.f32.mrf.mxu0
          %v1085 = vadd.f32 %v843, %v1084
          %v1086 = vpop.f32.mrf.mxu0
          %v1087 = vpop.f32.mrf.mxu0
          %1088 = vdwg.mxu0
          %1089 = vmatprep.subr.bf16.mxu0 %v1015
          %1090 = vmatpush1.bf16.msra.mxu0 %v1014
          %1091 = vmatprep.subr.bf16.mxu0 %v1011
          %1092 = vmatpush1.bf16.msra.mxu0 %v1010
          %1093 = vmatprep.subr.bf16.mxu0 %v1007
          %1094 = vmatpush1.bf16.msra.mxu0 %v1006
          %1095 = vmatprep.subr.bf16.mxu0 %v1003
          %1096 = vmatpush1.bf16.msra.mxu0 %v1002
          %1097 = vmatprep.subr.bf16.mxu0 %v999
          %1098 = vmatpush1.bf16.msra.mxu0 %v998
          %1099 = vmatprep.subr.bf16.mxu0 %v995
          %1100 = vmatpush1.bf16.msra.mxu0 %v994
          %1101 = vmatprep.subr.bf16.mxu0 %v991
          %1102 = vmatpush1.bf16.msra.mxu0 %v990
          %1103 = vmatprep.subr.bf16.mxu0 %v987
          %1104 = vmatpush1.bf16.msra.mxu0 %v986
          %1105 = vmatprep.subr.bf16.mxu0 0
          %1106 = vmatpush2.bf16.msra.mxu0 0
          %1107 = vmatprep.subr.bf16.mxu0 0
          %1108 = vmatpush2.bf16.msra.mxu0 0
          %1109 = vmatprep.subr.bf16.mxu0 0
          %1110 = vmatpush2.bf16.msra.mxu0 0
          %1111 = vmatprep.subr.bf16.mxu0 0
          %1112 = vmatpush2.bf16.msra.mxu0 0
          %1113 = vmatprep.subr.bf16.mxu0 0
          %1114 = vmatpush2.bf16.msra.mxu0 0
          %1115 = vmatprep.subr.bf16.mxu0 0
          %1116 = vmatpush2.bf16.msra.mxu0 0
          %1117 = vmatprep.subr.bf16.mxu0 0
          %1118 = vmatpush2.bf16.msra.mxu0 0
          %1119 = vmatprep.subr.bf16.mxu0 0
          %1120 = vmatpush2.bf16.msra.mxu0 0
          %1121 = vmatprep.mubr.bf16.mxu0 0
          %1122 = vmatmul.mubr.bf16.gmra.mxu0 %v562
          %v1123 = vpop.f32.mrf.mxu0
          %v1124 = vadd.f32 %v882, %v1123
          %v1125 = vpop.f32.mrf.mxu0
          %v1126 = vadd.f32 %v884, %v1125
          %v1127 = vpop.f32.mrf.mxu0
          %v1128 = vpop.f32.mrf.mxu0
          %1129 = vdwg.mxu0
          %v1130 = vld [vmem:[%s5] sm:$0xf]
          %v1132 = vlaneseq
          %v1133 = vshrl.u32 %v1132, 7
          %v1134 = vsub.s32 0, %v1133
          %v1135 = vrot.slane %v1130, %v1134
          %v1136 = vlaneseq
          %v1137 = vshrl.u32 %v1136, 7
          %v1138 = vsub.s32 1, %v1137
          %v1139 = vrot.slane %v1130, %v1138
          %v1140 = vlaneseq
          %v1141 = vshrl.u32 %v1140, 7
          %v1142 = vsub.s32 2, %v1141
          %v1143 = vrot.slane %v1130, %v1142
          %v1144 = vlaneseq
          %v1145 = vshrl.u32 %v1144, 7
          %v1146 = vsub.s32 3, %v1145
          %v1147 = vrot.slane %v1130, %v1146
          %v1152 = vadd.f32 %v1083, %v1135
          %v1153 = vadd.f32 %v1085, %v1139
          %v1154 = vadd.f32 %v1124, %v1143
          %v1155 = vadd.f32 %v1126, %v1147
          %v1156 = vxor.u32 %v1152, 2147483648
          %v1157 = vmul.f32 %v1156, 1.442695
          %v1158 = vpow.pop %v1157
          %v1159 = vadd.f32 %v1158, 1.0
          %v1160 = vrcp.pop %v1159
          %v1161 = vmul.f32 1.0, %v1160
          %v1162 = vxor.u32 %v1153, 2147483648
          %v1163 = vmul.f32 %v1162, 1.442695
          %v1164 = vpow.pop %v1163
          %v1165 = vadd.f32 %v1164, 1.0
          %v1166 = vrcp.pop %v1165
          %v1167 = vmul.f32 1.0, %v1166
          %v1168 = vtanh.pop %v1154
          %v1169 = vxor.u32 %v1155, 2147483648
          %v1170 = vmul.f32 %v1169, 1.442695
          %v1171 = vpow.pop %v1170
          %v1172 = vadd.f32 %v1171, 1.0
          %v1173 = vrcp.pop %v1172
          %v1174 = vmul.f32 1.0, %v1173
          %v1175 = vmul.f32 %v1167, %v561
          %v1176 = vmul.f32 %v1161, %v1168
          %v1177 = vadd.f32 %v1175, %v1176
          %v1178 = vtanh.pop %v1177
          %v1179 = vmul.f32 %v1174, %v1178
          %1180 = vst [vmem:[#allocation18] sm:$0xff] %v1179
          %1181 = vst [vmem:[#allocation20] sm:$0xff] %v1177
          %s1182 = scalar_lea.vmem [#allocation11], 8
          %v1183 = vld [vmem:[%s1182] sm:$0xff]
          %s1184 = scalar_lea.vmem [#allocation12], 8
          %v1185 = vld [vmem:[%s1184] sm:$0xff]
          %v1186 = vpack.c.bf16 %v1179, %v1179
          %s1187 = scalar_lea.vmem [#allocation14], 512
          %v1188 = vld [vmem:[%s1187] sm:$0xff]
          %v1189 = vld [vmem:[%s1187 + $0x8] sm:$0xff]
          %v1190 = vld [vmem:[%s1187 + $0x10] sm:$0xff]
          %v1191 = vld [vmem:[%s1187 + $0x18] sm:$0xff]
          %v1192 = vld [vmem:[%s1187 + $0x20] sm:$0xff]
          %v1193 = vld [vmem:[%s1187 + $0x28] sm:$0xff]
          %v1194 = vld [vmem:[%s1187 + $0x30] sm:$0xff]
          %v1195 = vld [vmem:[%s1187 + $0x38] sm:$0xff]
          %v1196 = vld [vmem:[%s1187 + $0x40] sm:$0xff]
          %v1197 = vld [vmem:[%s1187 + $0x48] sm:$0xff]
          %v1198 = vld [vmem:[%s1187 + $0x50] sm:$0xff]
          %v1199 = vld [vmem:[%s1187 + $0x58] sm:$0xff]
          %v1200 = vld [vmem:[%s1187 + $0x60] sm:$0xff]
          %v1201 = vld [vmem:[%s1187 + $0x68] sm:$0xff]
          %v1202 = vld [vmem:[%s1187 + $0x70] sm:$0xff]
          %v1203 = vld [vmem:[%s1187 + $0x78] sm:$0xff]
          %v1204 = vld [vmem:[%s1187 + $0x80] sm:$0xff]
          %v1205 = vld [vmem:[%s1187 + $0x88] sm:$0xff]
          %v1206 = vld [vmem:[%s1187 + $0x90] sm:$0xff]
          %v1207 = vld [vmem:[%s1187 + $0x98] sm:$0xff]
          %v1208 = vld [vmem:[%s1187 + $0xa0] sm:$0xff]
          %v1209 = vld [vmem:[%s1187 + $0xa8] sm:$0xff]
          %v1210 = vld [vmem:[%s1187 + $0xb0] sm:$0xff]
          %v1211 = vld [vmem:[%s1187 + $0xb8] sm:$0xff]
          %v1212 = vld [vmem:[%s1187 + $0xc0] sm:$0xff]
          %v1213 = vld [vmem:[%s1187 + $0xc8] sm:$0xff]
          %v1214 = vld [vmem:[%s1187 + $0xd0] sm:$0xff]
          %v1215 = vld [vmem:[%s1187 + $0xd8] sm:$0xff]
          %v1216 = vld [vmem:[%s1187 + $0xe0] sm:$0xff]
          %v1217 = vld [vmem:[%s1187 + $0xe8] sm:$0xff]
          %v1218 = vld [vmem:[%s1187 + $0xf0] sm:$0xff]
          %v1219 = vld [vmem:[%s1187 + $0xf8] sm:$0xff]
          %v1220 = vpack.c.bf16 %v1183, %v1183
          %v1221 = vld [vmem:[%s1187 + $0x100] sm:$0xff]
          %v1222 = vld [vmem:[%s1187 + $0x108] sm:$0xff]
          %v1223 = vld [vmem:[%s1187 + $0x110] sm:$0xff]
          %v1224 = vld [vmem:[%s1187 + $0x118] sm:$0xff]
          %v1225 = vld [vmem:[%s1187 + $0x120] sm:$0xff]
          %v1226 = vld [vmem:[%s1187 + $0x128] sm:$0xff]
          %v1227 = vld [vmem:[%s1187 + $0x130] sm:$0xff]
          %v1228 = vld [vmem:[%s1187 + $0x138] sm:$0xff]
          %v1229 = vld [vmem:[%s1187 + $0x140] sm:$0xff]
          %v1230 = vld [vmem:[%s1187 + $0x148] sm:$0xff]
          %v1231 = vld [vmem:[%s1187 + $0x150] sm:$0xff]
          %v1232 = vld [vmem:[%s1187 + $0x158] sm:$0xff]
          %v1233 = vld [vmem:[%s1187 + $0x160] sm:$0xff]
          %v1234 = vld [vmem:[%s1187 + $0x168] sm:$0xff]
          %v1235 = vld [vmem:[%s1187 + $0x170] sm:$0xff]
          %v1236 = vld [vmem:[%s1187 + $0x178] sm:$0xff]
          %v1237 = vld [vmem:[%s1187 + $0x180] sm:$0xff]
          %v1238 = vld [vmem:[%s1187 + $0x188] sm:$0xff]
          %v1239 = vld [vmem:[%s1187 + $0x190] sm:$0xff]
          %v1240 = vld [vmem:[%s1187 + $0x198] sm:$0xff]
          %v1241 = vld [vmem:[%s1187 + $0x1a0] sm:$0xff]
          %v1242 = vld [vmem:[%s1187 + $0x1a8] sm:$0xff]
          %v1243 = vld [vmem:[%s1187 + $0x1b0] sm:$0xff]
          %v1244 = vld [vmem:[%s1187 + $0x1b8] sm:$0xff]
          %v1245 = vld [vmem:[%s1187 + $0x1c0] sm:$0xff]
          %v1246 = vld [vmem:[%s1187 + $0x1c8] sm:$0xff]
          %v1247 = vld [vmem:[%s1187 + $0x1d0] sm:$0xff]
          %v1248 = vld [vmem:[%s1187 + $0x1d8] sm:$0xff]
          %v1249 = vld [vmem:[%s1187 + $0x1e0] sm:$0xff]
          %v1250 = vld [vmem:[%s1187 + $0x1e8] sm:$0xff]
          %v1251 = vld [vmem:[%s1187 + $0x1f0] sm:$0xff]
          %v1252 = vld [vmem:[%s1187 + $0x1f8] sm:$0xff]
          %v1285 = vunpack.c.l.b16 %v1221
          %v1286 = vunpack.c.h.b16 %v1221
          %v1287 = vunpack.c.l.b16 %v1222
          %v1288 = vunpack.c.h.b16 %v1222
          %v1289 = vunpack.c.l.b16 %v1223
          %v1290 = vunpack.c.h.b16 %v1223
          %v1291 = vunpack.c.l.b16 %v1224
          %v1292 = vunpack.c.h.b16 %v1224
          %v1293 = vunpack.c.l.b16 %v1225
          %v1294 = vunpack.c.h.b16 %v1225
          %v1295 = vunpack.c.l.b16 %v1226
          %v1296 = vunpack.c.h.b16 %v1226
          %v1297 = vunpack.c.l.b16 %v1227
          %v1298 = vunpack.c.h.b16 %v1227
          %v1299 = vunpack.c.l.b16 %v1228
          %v1300 = vunpack.c.h.b16 %v1228
          %v1301 = vunpack.c.l.b16 %v1229
          %v1302 = vunpack.c.h.b16 %v1229
          %v1303 = vunpack.c.l.b16 %v1230
          %v1304 = vunpack.c.h.b16 %v1230
          %v1305 = vunpack.c.l.b16 %v1231
          %v1306 = vunpack.c.h.b16 %v1231
          %v1307 = vunpack.c.l.b16 %v1232
          %v1308 = vunpack.c.h.b16 %v1232
          %v1309 = vunpack.c.l.b16 %v1233
          %v1310 = vunpack.c.h.b16 %v1233
          %v1311 = vunpack.c.l.b16 %v1234
          %v1312 = vunpack.c.h.b16 %v1234
          %v1313 = vunpack.c.l.b16 %v1235
          %v1314 = vunpack.c.h.b16 %v1235
          %v1315 = vunpack.c.l.b16 %v1236
          %v1316 = vunpack.c.h.b16 %v1236
          %v1317 = vunpack.c.l.b16 %v1237
          %v1318 = vunpack.c.h.b16 %v1237
          %v1319 = vunpack.c.l.b16 %v1238
          %v1320 = vunpack.c.h.b16 %v1238
          %v1321 = vunpack.c.l.b16 %v1239
          %v1322 = vunpack.c.h.b16 %v1239
          %v1323 = vunpack.c.l.b16 %v1240
          %v1324 = vunpack.c.h.b16 %v1240
          %v1325 = vunpack.c.l.b16 %v1241
          %v1326 = vunpack.c.h.b16 %v1241
          %v1327 = vunpack.c.l.b16 %v1242
          %v1328 = vunpack.c.h.b16 %v1242
          %v1329 = vunpack.c.l.b16 %v1243
          %v1330 = vunpack.c.h.b16 %v1243
          %v1331 = vunpack.c.l.b16 %v1244
          %v1332 = vunpack.c.h.b16 %v1244
          %v1333 = vunpack.c.l.b16 %v1245
          %v1334 = vunpack.c.h.b16 %v1245
          %v1335 = vunpack.c.l.b16 %v1246
          %v1336 = vunpack.c.h.b16 %v1246
          %v1337 = vunpack.c.l.b16 %v1247
          %v1338 = vunpack.c.h.b16 %v1247
          %v1339 = vunpack.c.l.b16 %v1248
          %v1340 = vunpack.c.h.b16 %v1248
          %v1341 = vunpack.c.l.b16 %v1249
          %v1342 = vunpack.c.h.b16 %v1249
          %v1343 = vunpack.c.l.b16 %v1250
          %v1344 = vunpack.c.h.b16 %v1250
          %v1345 = vunpack.c.l.b16 %v1251
          %v1346 = vunpack.c.h.b16 %v1251
          %v1347 = vunpack.c.l.b16 %v1252
          %v1348 = vunpack.c.h.b16 %v1252
          %v1349 = vpack.c.b16 %v1289, %v1285
          %v1350 = vpack.c.b16 %v1290, %v1286
          %v1351 = vpack.c.b16 %v1291, %v1287
          %v1352 = vpack.c.b16 %v1292, %v1288
          %v1353 = vpack.c.b16 %v1297, %v1293
          %v1354 = vpack.c.b16 %v1298, %v1294
          %v1355 = vpack.c.b16 %v1299, %v1295
          %v1356 = vpack.c.b16 %v1300, %v1296
          %v1357 = vpack.c.b16 %v1305, %v1301
          %v1358 = vpack.c.b16 %v1306, %v1302
          %v1359 = vpack.c.b16 %v1307, %v1303
          %v1360 = vpack.c.b16 %v1308, %v1304
          %v1361 = vpack.c.b16 %v1313, %v1309
          %v1362 = vpack.c.b16 %v1314, %v1310
          %v1363 = vpack.c.b16 %v1315, %v1311
          %v1364 = vpack.c.b16 %v1316, %v1312
          %v1365 = vpack.c.b16 %v1321, %v1317
          %v1366 = vpack.c.b16 %v1322, %v1318
          %v1367 = vpack.c.b16 %v1323, %v1319
          %v1368 = vpack.c.b16 %v1324, %v1320
          %v1369 = vpack.c.b16 %v1329, %v1325
          %v1370 = vpack.c.b16 %v1330, %v1326
          %v1371 = vpack.c.b16 %v1331, %v1327
          %v1372 = vpack.c.b16 %v1332, %v1328
          %v1373 = vpack.c.b16 %v1337, %v1333
          %v1374 = vpack.c.b16 %v1338, %v1334
          %v1375 = vpack.c.b16 %v1339, %v1335
          %v1376 = vpack.c.b16 %v1340, %v1336
          %v1377 = vpack.c.b16 %v1345, %v1341
          %v1378 = vpack.c.b16 %v1346, %v1342
          %v1379 = vpack.c.b16 %v1347, %v1343
          %v1380 = vpack.c.b16 %v1348, %v1344
          %1413 = vmatprep.subr.bf16.mxu0 %v1378
          %1414 = vmatpush1.bf16.msra.mxu0 %v1377
          %1415 = vmatprep.subr.bf16.mxu0 %v1374
          %1416 = vmatpush1.bf16.msra.mxu0 %v1373
          %1417 = vmatprep.subr.bf16.mxu0 %v1370
          %1418 = vmatpush1.bf16.msra.mxu0 %v1369
          %1419 = vmatprep.subr.bf16.mxu0 %v1366
          %1420 = vmatpush1.bf16.msra.mxu0 %v1365
          %1421 = vmatprep.subr.bf16.mxu0 %v1362
          %1422 = vmatpush1.bf16.msra.mxu0 %v1361
          %1423 = vmatprep.subr.bf16.mxu0 %v1358
          %1424 = vmatpush1.bf16.msra.mxu0 %v1357
          %1425 = vmatprep.subr.bf16.mxu0 %v1354
          %1426 = vmatpush1.bf16.msra.mxu0 %v1353
          %1427 = vmatprep.subr.bf16.mxu0 %v1350
          %1428 = vmatpush1.bf16.msra.mxu0 %v1349
          %1429 = vmatprep.subr.bf16.mxu0 0
          %1430 = vmatpush2.bf16.msra.mxu0 0
          %1431 = vmatprep.subr.bf16.mxu0 0
          %1432 = vmatpush2.bf16.msra.mxu0 0
          %1433 = vmatprep.subr.bf16.mxu0 0
          %1434 = vmatpush2.bf16.msra.mxu0 0
          %1435 = vmatprep.subr.bf16.mxu0 0
          %1436 = vmatpush2.bf16.msra.mxu0 0
          %1437 = vmatprep.subr.bf16.mxu0 0
          %1438 = vmatpush2.bf16.msra.mxu0 0
          %1439 = vmatprep.subr.bf16.mxu0 0
          %1440 = vmatpush2.bf16.msra.mxu0 0
          %1441 = vmatprep.subr.bf16.mxu0 0
          %1442 = vmatpush2.bf16.msra.mxu0 0
          %1443 = vmatprep.subr.bf16.mxu0 0
          %1444 = vmatpush2.bf16.msra.mxu0 0
          %1445 = vmatprep.mubr.bf16.mxu0 0
          %1446 = vmatmul.mubr.bf16.gmra.mxu0 %v1220
          %v1447 = vpop.f32.mrf.mxu0
          %v1448 = vadd.f32 0.0, %v1447
          %v1449 = vpop.f32.mrf.mxu0
          %v1450 = vadd.f32 0.0, %v1449
          %v1451 = vpop.f32.mrf.mxu0
          %v1452 = vpop.f32.mrf.mxu0
          %1453 = vdwg.mxu0
          %1454 = vmatprep.subr.bf16.mxu0 %v1380
          %1455 = vmatpush1.bf16.msra.mxu0 %v1379
          %1456 = vmatprep.subr.bf16.mxu0 %v1376
          %1457 = vmatpush1.bf16.msra.mxu0 %v1375
          %1458 = vmatprep.subr.bf16.mxu0 %v1372
          %1459 = vmatpush1.bf16.msra.mxu0 %v1371
          %1460 = vmatprep.subr.bf16.mxu0 %v1368
          %1461 = vmatpush1.bf16.msra.mxu0 %v1367
          %1462 = vmatprep.subr.bf16.mxu0 %v1364
          %1463 = vmatpush1.bf16.msra.mxu0 %v1363
          %1464 = vmatprep.subr.bf16.mxu0 %v1360
          %1465 = vmatpush1.bf16.msra.mxu0 %v1359
          %1466 = vmatprep.subr.bf16.mxu0 %v1356
          %1467 = vmatpush1.bf16.msra.mxu0 %v1355
          %1468 = vmatprep.subr.bf16.mxu0 %v1352
          %1469 = vmatpush1.bf16.msra.mxu0 %v1351
          %1470 = vmatprep.subr.bf16.mxu0 0
          %1471 = vmatpush2.bf16.msra.mxu0 0
          %1472 = vmatprep.subr.bf16.mxu0 0
          %1473 = vmatpush2.bf16.msra.mxu0 0
          %1474 = vmatprep.subr.bf16.mxu0 0
          %1475 = vmatpush2.bf16.msra.mxu0 0
          %1476 = vmatprep.subr.bf16.mxu0 0
          %1477 = vmatpush2.bf16.msra.mxu0 0
          %1478 = vmatprep.subr.bf16.mxu0 0
          %1479 = vmatpush2.bf16.msra.mxu0 0
          %1480 = vmatprep.subr.bf16.mxu0 0
          %1481 = vmatpush2.bf16.msra.mxu0 0
          %1482 = vmatprep.subr.bf16.mxu0 0
          %1483 = vmatpush2.bf16.msra.mxu0 0
          %1484 = vmatprep.subr.bf16.mxu0 0
          %1485 = vmatpush2.bf16.msra.mxu0 0
          %1486 = vmatprep.mubr.bf16.mxu0 0
          %1487 = vmatmul.mubr.bf16.gmra.mxu0 %v1220
          %v1488 = vpop.f32.mrf.mxu0
          %v1489 = vadd.f32 0.0, %v1488
          %v1490 = vpop.f32.mrf.mxu0
          %v1491 = vadd.f32 0.0, %v1490
          %v1492 = vpop.f32.mrf.mxu0
          %v1493 = vpop.f32.mrf.mxu0
          %1494 = vdwg.mxu0
          %v1527 = vunpack.c.l.b16 %v1188
          %v1528 = vunpack.c.h.b16 %v1188
          %v1529 = vunpack.c.l.b16 %v1189
          %v1530 = vunpack.c.h.b16 %v1189
          %v1531 = vunpack.c.l.b16 %v1190
          %v1532 = vunpack.c.h.b16 %v1190
          %v1533 = vunpack.c.l.b16 %v1191
          %v1534 = vunpack.c.h.b16 %v1191
          %v1535 = vunpack.c.l.b16 %v1192
          %v1536 = vunpack.c.h.b16 %v1192
          %v1537 = vunpack.c.l.b16 %v1193
          %v1538 = vunpack.c.h.b16 %v1193
          %v1539 = vunpack.c.l.b16 %v1194
          %v1540 = vunpack.c.h.b16 %v1194
          %v1541 = vunpack.c.l.b16 %v1195
          %v1542 = vunpack.c.h.b16 %v1195
          %v1543 = vunpack.c.l.b16 %v1196
          %v1544 = vunpack.c.h.b16 %v1196
          %v1545 = vunpack.c.l.b16 %v1197
          %v1546 = vunpack.c.h.b16 %v1197
          %v1547 = vunpack.c.l.b16 %v1198
          %v1548 = vunpack.c.h.b16 %v1198
          %v1549 = vunpack.c.l.b16 %v1199
          %v1550 = vunpack.c.h.b16 %v1199
          %v1551 = vunpack.c.l.b16 %v1200
          %v1552 = vunpack.c.h.b16 %v1200
          %v1553 = vunpack.c.l.b16 %v1201
          %v1554 = vunpack.c.h.b16 %v1201
          %v1555 = vunpack.c.l.b16 %v1202
          %v1556 = vunpack.c.h.b16 %v1202
          %v1557 = vunpack.c.l.b16 %v1203
          %v1558 = vunpack.c.h.b16 %v1203
          %v1559 = vunpack.c.l.b16 %v1204
          %v1560 = vunpack.c.h.b16 %v1204
          %v1561 = vunpack.c.l.b16 %v1205
          %v1562 = vunpack.c.h.b16 %v1205
          %v1563 = vunpack.c.l.b16 %v1206
          %v1564 = vunpack.c.h.b16 %v1206
          %v1565 = vunpack.c.l.b16 %v1207
          %v1566 = vunpack.c.h.b16 %v1207
          %v1567 = vunpack.c.l.b16 %v1208
          %v1568 = vunpack.c.h.b16 %v1208
          %v1569 = vunpack.c.l.b16 %v1209
          %v1570 = vunpack.c.h.b16 %v1209
          %v1571 = vunpack.c.l.b16 %v1210
          %v1572 = vunpack.c.h.b16 %v1210
          %v1573 = vunpack.c.l.b16 %v1211
          %v1574 = vunpack.c.h.b16 %v1211
          %v1575 = vunpack.c.l.b16 %v1212
          %v1576 = vunpack.c.h.b16 %v1212
          %v1577 = vunpack.c.l.b16 %v1213
          %v1578 = vunpack.c.h.b16 %v1213
          %v1579 = vunpack.c.l.b16 %v1214
          %v1580 = vunpack.c.h.b16 %v1214
          %v1581 = vunpack.c.l.b16 %v1215
          %v1582 = vunpack.c.h.b16 %v1215
          %v1583 = vunpack.c.l.b16 %v1216
          %v1584 = vunpack.c.h.b16 %v1216
          %v1585 = vunpack.c.l.b16 %v1217
          %v1586 = vunpack.c.h.b16 %v1217
          %v1587 = vunpack.c.l.b16 %v1218
          %v1588 = vunpack.c.h.b16 %v1218
          %v1589 = vunpack.c.l.b16 %v1219
          %v1590 = vunpack.c.h.b16 %v1219
          %v1591 = vpack.c.b16 %v1531, %v1527
          %v1592 = vpack.c.b16 %v1532, %v1528
          %v1593 = vpack.c.b16 %v1533, %v1529
          %v1594 = vpack.c.b16 %v1534, %v1530
          %v1595 = vpack.c.b16 %v1539, %v1535
          %v1596 = vpack.c.b16 %v1540, %v1536
          %v1597 = vpack.c.b16 %v1541, %v1537
          %v1598 = vpack.c.b16 %v1542, %v1538
          %v1599 = vpack.c.b16 %v1547, %v1543
          %v1600 = vpack.c.b16 %v1548, %v1544
          %v1601 = vpack.c.b16 %v1549, %v1545
          %v1602 = vpack.c.b16 %v1550, %v1546
          %v1603 = vpack.c.b16 %v1555, %v1551
          %v1604 = vpack.c.b16 %v1556, %v1552
          %v1605 = vpack.c.b16 %v1557, %v1553
          %v1606 = vpack.c.b16 %v1558, %v1554
          %v1607 = vpack.c.b16 %v1563, %v1559
          %v1608 = vpack.c.b16 %v1564, %v1560
          %v1609 = vpack.c.b16 %v1565, %v1561
          %v1610 = vpack.c.b16 %v1566, %v1562
          %v1611 = vpack.c.b16 %v1571, %v1567
          %v1612 = vpack.c.b16 %v1572, %v1568
          %v1613 = vpack.c.b16 %v1573, %v1569
          %v1614 = vpack.c.b16 %v1574, %v1570
          %v1615 = vpack.c.b16 %v1579, %v1575
          %v1616 = vpack.c.b16 %v1580, %v1576
          %v1617 = vpack.c.b16 %v1581, %v1577
          %v1618 = vpack.c.b16 %v1582, %v1578
          %v1619 = vpack.c.b16 %v1587, %v1583
          %v1620 = vpack.c.b16 %v1588, %v1584
          %v1621 = vpack.c.b16 %v1589, %v1585
          %v1622 = vpack.c.b16 %v1590, %v1586
          %1655 = vmatprep.subr.bf16.mxu0 %v1620
          %1656 = vmatpush1.bf16.msra.mxu0 %v1619
          %1657 = vmatprep.subr.bf16.mxu0 %v1616
          %1658 = vmatpush1.bf16.msra.mxu0 %v1615
          %1659 = vmatprep.subr.bf16.mxu0 %v1612
          %1660 = vmatpush1.bf16.msra.mxu0 %v1611
          %1661 = vmatprep.subr.bf16.mxu0 %v1608
          %1662 = vmatpush1.bf16.msra.mxu0 %v1607
          %1663 = vmatprep.subr.bf16.mxu0 %v1604
          %1664 = vmatpush1.bf16.msra.mxu0 %v1603
          %1665 = vmatprep.subr.bf16.mxu0 %v1600
          %1666 = vmatpush1.bf16.msra.mxu0 %v1599
          %1667 = vmatprep.subr.bf16.mxu0 %v1596
          %1668 = vmatpush1.bf16.msra.mxu0 %v1595
          %1669 = vmatprep.subr.bf16.mxu0 %v1592
          %1670 = vmatpush1.bf16.msra.mxu0 %v1591
          %1671 = vmatprep.subr.bf16.mxu0 0
          %1672 = vmatpush2.bf16.msra.mxu0 0
          %1673 = vmatprep.subr.bf16.mxu0 0
          %1674 = vmatpush2.bf16.msra.mxu0 0
          %1675 = vmatprep.subr.bf16.mxu0 0
          %1676 = vmatpush2.bf16.msra.mxu0 0
          %1677 = vmatprep.subr.bf16.mxu0 0
          %1678 = vmatpush2.bf16.msra.mxu0 0
          %1679 = vmatprep.subr.bf16.mxu0 0
          %1680 = vmatpush2.bf16.msra.mxu0 0
          %1681 = vmatprep.subr.bf16.mxu0 0
          %1682 = vmatpush2.bf16.msra.mxu0 0
          %1683 = vmatprep.subr.bf16.mxu0 0
          %1684 = vmatpush2.bf16.msra.mxu0 0
          %1685 = vmatprep.subr.bf16.mxu0 0
          %1686 = vmatpush2.bf16.msra.mxu0 0
          %1687 = vmatprep.mubr.bf16.mxu0 0
          %1688 = vmatmul.mubr.bf16.gmra.mxu0 %v1186
          %v1689 = vpop.f32.mrf.mxu0
          %v1690 = vadd.f32 %v1448, %v1689
          %v1691 = vpop.f32.mrf.mxu0
          %v1692 = vadd.f32 %v1450, %v1691
          %v1693 = vpop.f32.mrf.mxu0
          %v1694 = vpop.f32.mrf.mxu0
          %1695 = vdwg.mxu0
          %1696 = vmatprep.subr.bf16.mxu0 %v1622
          %1697 = vmatpush1.bf16.msra.mxu0 %v1621
          %1698 = vmatprep.subr.bf16.mxu0 %v1618
          %1699 = vmatpush1.bf16.msra.mxu0 %v1617
          %1700 = vmatprep.subr.bf16.mxu0 %v1614
          %1701 = vmatpush1.bf16.msra.mxu0 %v1613
          %1702 = vmatprep.subr.bf16.mxu0 %v1610
          %1703 = vmatpush1.bf16.msra.mxu0 %v1609
          %1704 = vmatprep.subr.bf16.mxu0 %v1606
          %1705 = vmatpush1.bf16.msra.mxu0 %v1605
          %1706 = vmatprep.subr.bf16.mxu0 %v1602
          %1707 = vmatpush1.bf16.msra.mxu0 %v1601
          %1708 = vmatprep.subr.bf16.mxu0 %v1598
          %1709 = vmatpush1.bf16.msra.mxu0 %v1597
          %1710 = vmatprep.subr.bf16.mxu0 %v1594
          %1711 = vmatpush1.bf16.msra.mxu0 %v1593
          %1712 = vmatprep.subr.bf16.mxu0 0
          %1713 = vmatpush2.bf16.msra.mxu0 0
          %1714 = vmatprep.subr.bf16.mxu0 0
          %1715 = vmatpush2.bf16.msra.mxu0 0
          %1716 = vmatprep.subr.bf16.mxu0 0
          %1717 = vmatpush2.bf16.msra.mxu0 0
          %1718 = vmatprep.subr.bf16.mxu0 0
          %1719 = vmatpush2.bf16.msra.mxu0 0
          %1720 = vmatprep.subr.bf16.mxu0 0
          %1721 = vmatpush2.bf16.msra.mxu0 0
          %1722 = vmatprep.subr.bf16.mxu0 0
          %1723 = vmatpush2.bf16.msra.mxu0 0
          %1724 = vmatprep.subr.bf16.mxu0 0
          %1725 = vmatpush2.bf16.msra.mxu0 0
          %1726 = vmatprep.subr.bf16.mxu0 0
          %1727 = vmatpush2.bf16.msra.mxu0 0
          %1728 = vmatprep.mubr.bf16.mxu0 0
          %1729 = vmatmul.mubr.bf16.gmra.mxu0 %v1186
          %v1730 = vpop.f32.mrf.mxu0
          %v1731 = vadd.f32 %v1489, %v1730
          %v1732 = vpop.f32.mrf.mxu0
          %v1733 = vadd.f32 %v1491, %v1732
          %v1734 = vpop.f32.mrf.mxu0
          %v1735 = vpop.f32.mrf.mxu0
          %1736 = vdwg.mxu0
          %s1737 = scalar_lea.vmem %s5, 4
          %v1738 = vld [vmem:[%s1737] sm:$0xf]
          %v1740 = vlaneseq
          %v1741 = vshrl.u32 %v1740, 7
          %v1742 = vsub.s32 0, %v1741
          %v1743 = vrot.slane %v1738, %v1742
          %v1744 = vlaneseq
          %v1745 = vshrl.u32 %v1744, 7
          %v1746 = vsub.s32 1, %v1745
          %v1747 = vrot.slane %v1738, %v1746
          %v1748 = vlaneseq
          %v1749 = vshrl.u32 %v1748, 7
          %v1750 = vsub.s32 2, %v1749
          %v1751 = vrot.slane %v1738, %v1750
          %v1752 = vlaneseq
          %v1753 = vshrl.u32 %v1752, 7
          %v1754 = vsub.s32 3, %v1753
          %v1755 = vrot.slane %v1738, %v1754
          %v1760 = vadd.f32 %v1690, %v1743
          %v1761 = vadd.f32 %v1692, %v1747
          %v1762 = vadd.f32 %v1731, %v1751
          %v1763 = vadd.f32 %v1733, %v1755
          %v1764 = vxor.u32 %v1760, 2147483648
          %v1765 = vmul.f32 %v1764, 1.442695
          %v1766 = vpow.pop %v1765
          %v1767 = vadd.f32 %v1766, 1.0
          %v1768 = vrcp.pop %v1767
          %v1769 = vmul.f32 1.0, %v1768
          %v1770 = vxor.u32 %v1761, 2147483648
          %v1771 = vmul.f32 %v1770, 1.442695
          %v1772 = vpow.pop %v1771
          %v1773 = vadd.f32 %v1772, 1.0
          %v1774 = vrcp.pop %v1773
          %v1775 = vmul.f32 1.0, %v1774
          %v1776 = vtanh.pop %v1762
          %v1777 = vxor.u32 %v1763, 2147483648
          %v1778 = vmul.f32 %v1777, 1.442695
          %v1779 = vpow.pop %v1778
          %v1780 = vadd.f32 %v1779, 1.0
          %v1781 = vrcp.pop %v1780
          %v1782 = vmul.f32 1.0, %v1781
          %v1783 = vmul.f32 %v1775, %v1185
          %v1784 = vmul.f32 %v1769, %v1776
          %v1785 = vadd.f32 %v1783, %v1784
          %v1786 = vtanh.pop %v1785
          %v1787 = vmul.f32 %v1782, %v1786
          %s1788 = scalar_lea.vmem [#allocation18], 8
          %1789 = vst [vmem:[%s1788] sm:$0xff] %v1787
          %s1790 = scalar_lea.vmem [#allocation20], 8
          %1791 = vst [vmem:[%s1790] sm:$0xff] %v1785
          %v1792 = vpack.c.bf16 %v1787, %v1787
          %1793 = vst [vmem:[#allocation2] sm:$0xf] %v1792
        $region72: #{tpu_custom_call.1} parent=47 // pred_fallthru
          _
        %s1794 = smul.u32 %s30, 256
        %v1795 = vld [vmem:[#allocation2] sm:$0xf]
        %v1796 = vld [vmem:[%s363] sm:$0xff]
        %v1797 = vld [vmem:[%s363 + $0x8] sm:$0xff]
        %v1798 = vld [vmem:[%s363 + $0x10] sm:$0xff]
        %v1799 = vld [vmem:[%s363 + $0x18] sm:$0xff]
        %v1800 = vld [vmem:[%s363 + $0x20] sm:$0xff]
        %v1801 = vld [vmem:[%s363 + $0x28] sm:$0xff]
        %v1802 = vld [vmem:[%s363 + $0x30] sm:$0xff]
        %v1803 = vld [vmem:[%s363 + $0x38] sm:$0xff]
        %v1804 = vld [vmem:[%s363 + $0x40] sm:$0xff]
        %v1805 = vld [vmem:[%s363 + $0x48] sm:$0xff]
        %v1806 = vld [vmem:[%s363 + $0x50] sm:$0xff]
        %v1807 = vld [vmem:[%s363 + $0x58] sm:$0xff]
        %v1808 = vld [vmem:[%s363 + $0x60] sm:$0xff]
        %v1809 = vld [vmem:[%s363 + $0x68] sm:$0xff]
        %v1810 = vld [vmem:[%s363 + $0x70] sm:$0xff]
        %v1811 = vld [vmem:[%s363 + $0x78] sm:$0xff]
        %s1812 = sshra.s32 %s1794, 7
        %s1813 = sand.u32 %s1794, 127
        %s1814 = scalar_lea.vmem %s7, %s1812
        %v1815 = vld [vmem:[%s1814] sm:$0x3]
        %v1817 = vlaneseq
        %v1818 = vshrl.u32 %v1817, 7
        %v1819 = vsub.s32 0, %v1818
        %v1820 = vrot.slane %v1815, %v1819
        %v1821 = vlaneseq
        %v1822 = vshrl.u32 %v1821, 7
        %v1823 = vsub.s32 1, %v1822
        %v1824 = vrot.slane %v1815, %v1823
        %v1843 = vunpack.c.l.b16 %v1796
        %v1844 = vunpack.c.h.b16 %v1796
        %v1845 = vunpack.c.l.b16 %v1797
        %v1846 = vunpack.c.h.b16 %v1797
        %v1847 = vunpack.c.l.b16 %v1798
        %v1848 = vunpack.c.h.b16 %v1798
        %v1849 = vunpack.c.l.b16 %v1799
        %v1850 = vunpack.c.h.b16 %v1799
        %v1851 = vunpack.c.l.b16 %v1800
        %v1852 = vunpack.c.h.b16 %v1800
        %v1853 = vunpack.c.l.b16 %v1801
        %v1854 = vunpack.c.h.b16 %v1801
        %v1855 = vunpack.c.l.b16 %v1802
        %v1856 = vunpack.c.h.b16 %v1802
        %v1857 = vunpack.c.l.b16 %v1803
        %v1858 = vunpack.c.h.b16 %v1803
        %v1859 = vunpack.c.l.b16 %v1804
        %v1860 = vunpack.c.h.b16 %v1804
        %v1861 = vunpack.c.l.b16 %v1805
        %v1862 = vunpack.c.h.b16 %v1805
        %v1863 = vunpack.c.l.b16 %v1806
        %v1864 = vunpack.c.h.b16 %v1806
        %v1865 = vunpack.c.l.b16 %v1807
        %v1866 = vunpack.c.h.b16 %v1807
        %v1867 = vunpack.c.l.b16 %v1808
        %v1868 = vunpack.c.h.b16 %v1808
        %v1869 = vunpack.c.l.b16 %v1809
        %v1870 = vunpack.c.h.b16 %v1809
        %v1871 = vunpack.c.l.b16 %v1810
        %v1872 = vunpack.c.h.b16 %v1810
        %v1873 = vunpack.c.l.b16 %v1811
        %v1874 = vunpack.c.h.b16 %v1811
        %v1875 = vpack.c.b16 %v1845, %v1843
        %v1876 = vpack.c.b16 %v1846, %v1844
        %v1877 = vpack.c.b16 %v1849, %v1847
        %v1878 = vpack.c.b16 %v1850, %v1848
        %v1879 = vpack.c.b16 %v1853, %v1851
        %v1880 = vpack.c.b16 %v1854, %v1852
        %v1881 = vpack.c.b16 %v1857, %v1855
        %v1882 = vpack.c.b16 %v1858, %v1856
        %v1883 = vpack.c.b16 %v1861, %v1859
        %v1884 = vpack.c.b16 %v1862, %v1860
        %v1885 = vpack.c.b16 %v1865, %v1863
        %v1886 = vpack.c.b16 %v1866, %v1864
        %v1887 = vpack.c.b16 %v1869, %v1867
        %v1888 = vpack.c.b16 %v1870, %v1868
        %v1889 = vpack.c.b16 %v1873, %v1871
        %v1890 = vpack.c.b16 %v1874, %v1872
        %1907 = vmatprep.subr.bf16.mxu0 %v1890
        %1908 = vmatpush1.bf16.msra.mxu0 %v1889
        %1909 = vmatprep.subr.bf16.mxu0 %v1888
        %1910 = vmatpush1.bf16.msra.mxu0 %v1887
        %1911 = vmatprep.subr.bf16.mxu0 %v1886
        %1912 = vmatpush1.bf16.msra.mxu0 %v1885
        %1913 = vmatprep.subr.bf16.mxu0 %v1884
        %1914 = vmatpush1.bf16.msra.mxu0 %v1883
        %1915 = vmatprep.subr.bf16.mxu0 %v1882
        %1916 = vmatpush1.bf16.msra.mxu0 %v1881
        %1917 = vmatprep.subr.bf16.mxu0 %v1880
        %1918 = vmatpush1.bf16.msra.mxu0 %v1879
        %1919 = vmatprep.subr.bf16.mxu0 %v1878
        %1920 = vmatpush1.bf16.msra.mxu0 %v1877
        %1921 = vmatprep.subr.bf16.mxu0 %v1876
        %1922 = vmatpush1.bf16.msra.mxu0 %v1875
        %1923 = vmatprep.subr.bf16.mxu0 0
        %1924 = vmatpush2.bf16.msra.mxu0 0
        %1925 = vmatprep.subr.bf16.mxu0 0
        %1926 = vmatpush2.bf16.msra.mxu0 0
        %1927 = vmatprep.subr.bf16.mxu0 0
        %1928 = vmatpush2.bf16.msra.mxu0 0
        %1929 = vmatprep.subr.bf16.mxu0 0
        %1930 = vmatpush2.bf16.msra.mxu0 0
        %1931 = vmatprep.subr.bf16.mxu0 0
        %1932 = vmatpush2.bf16.msra.mxu0 0
        %1933 = vmatprep.subr.bf16.mxu0 0
        %1934 = vmatpush2.bf16.msra.mxu0 0
        %1935 = vmatprep.subr.bf16.mxu0 0
        %1936 = vmatpush2.bf16.msra.mxu0 0
        %1937 = vmatprep.subr.bf16.mxu0 0
        %1938 = vmatpush2.bf16.msra.mxu0 0
        %1939 = vmatprep.mubr.bf16.mxu0 0
        %1940 = vmatmul.mubr.bf16.gmra.mxu0 %v1795
        %v1941 = vpop.f32.mrf.mxu0
        %v1942 = vadd.f32 %v1820, %v1941
        %v1943 = vpop.f32.mrf.mxu0
        %v1944 = vadd.f32 %v1824, %v1943
        %v1945 = vpop.f32.mrf.mxu0
        %v1946 = vpop.f32.mrf.mxu0
        %1947 = vdwg.mxu0
        %s1948 = smul.addr %s1812, 8
        %s1949 = scalar_lea.vmem [#allocation17], %s1948
        %1950 = vst [vmem:[%s1949] sm:$0xff] %v1942
        %1951 = vst [vmem:[%s1949 + $0x8] sm:$0xff] %v1944
        %v1952 = vld [vmem:[#allocation4] sm:$0xff]
        %v1953 = vmax.f32 %v1942, %v1944
        %1954 = vmax.xlane.f32.xlu0 %v1953
        %v1955 = vpop.xlane.xlu0 %1954
        %v1956 = vmax.f32 %v1952, %v1955
        %v1957 = vld [vmem:[#allocation5] sm:$0xff]
        %v1958 = vsub.f32 %v1952, %v1956
        %v1959 = vmul.f32 %v1958, 1.442695
        %v1960 = vpow.pop %v1959
        %v1961 = vmul.f32 %v1957, %v1960
        %1963 = vset.pattern.permute.xlu0 0
        %1964 = vperm.xlu0 %1963, %v1956
        %v1965 = vpop.permute.xlu0 %1964
        %v1967 = vsub.f32 %v1942, %v1965
        %v1968 = vsub.f32 %v1944, %v1965
        %v1969 = vmul.f32 %v1967, 1.442695
        %v1970 = vpow.pop %v1969
        %v1971 = vmul.f32 %v1968, 1.442695
        %v1972 = vpow.pop %v1971
        %v1973 = vadd.f32 %v1970, %v1972
        %1974 = vadd.xlane.f32.xlu0 %v1973
        %v1975 = vpop.xlane.xlu0 %1974
        %v1976 = vadd.f32 %v1961, %v1975
        %vm1977 = vcmask 7168
        %1978 = vst.msk [vmem:[#allocation5] sm:$0xff] %vm1977, %v1976
        %1979 = vst.msk [vmem:[#allocation4] sm:$0xff] %vm1977, %v1956
        %p1980 = scmp.eq.s32.totalorder %s30, 1
        // Predicated region
        $region105: #{tpu_custom_call.1} parent=47 // pred_check
          %p1981 = pneg %p1980
        $region106: #{tpu_custom_call.1} parent=47 // pred_check_branch
          %1983 = sbr.rel (%p1981) target = $region108
        $region107: #{tpu_custom_call.1} parent=47 // pred_region
          %v1984 = vld [vmem:[#allocation4] sm:$0xff]
          %v1985 = vld [vmem:[#allocation5] sm:$0xff]
          %v1986 = vlog2.pop %v1985
          %v1987 = vmul.f32 %v1986, 0.6931472
          %v1988 = vadd.f32 %v1984, %v1987
          %v1989 = vld [vmem:[#allocation17] sm:$0xff]
          %v1990 = vld [vmem:[#allocation17 + $0x8] sm:$0xff]
          %v1991 = vld [vmem:[#allocation17 + $0x10] sm:$0xff]
          %v1992 = vld [vmem:[#allocation17 + $0x18] sm:$0xff]
          %1994 = vset.pattern.permute.xlu0 0
          %1995 = vperm.xlu0 %1994, %v1988
          %v1996 = vpop.permute.xlu0 %1995
          %v1998 = vsub.f32 %v1989, %v1996
          %v1999 = vsub.f32 %v1990, %v1996
          %v2000 = vsub.f32 %v1991, %v1996
          %v2001 = vsub.f32 %v1992, %v1996
          %2002 = vst [vmem:[#allocation17] sm:$0xff] %v1998
          %2003 = vst [vmem:[#allocation17 + $0x8] sm:$0xff] %v1999
          %2004 = vst [vmem:[#allocation17 + $0x10] sm:$0xff] %v2000
          %2005 = vst [vmem:[#allocation17 + $0x18] sm:$0xff] %v2001
        $region108: #{tpu_custom_call.1} parent=47 // pred_fallthru
          _
        // Predicated region
        $region109: #{tpu_custom_call.1} parent=47 // pred_check
          %p2006 = pneg %p195
        $region110: #{tpu_custom_call.1} parent=47 // pred_check_branch
          %2008 = sbr.rel (%p2006) target = $region112
        $region111: #{tpu_custom_call.1} parent=47 // pred_region
          %s2010 = ssub.s32 512, 512
          %2011 = vsyncadd [#allocation9], %s2010
          %s2013 = sshll.u32 [#allocation17], 4
          %s2014 = int_to_ptr.vmem [resolvable:$true] %s2013
          %2016 = dma.vmem_to_hbm [thread:$0]  %s2014, 512, %s8, [#allocation9]
        $region112: #{tpu_custom_call.1} parent=47 // pred_fallthru
          _
        // Predicated region
        $region113: #{tpu_custom_call.1} parent=47 // pred_check
          %p2017 = pneg %p216
        $region114: #{tpu_custom_call.1} parent=47 // pred_check_branch
          %2019 = sbr.rel (%p2017) target = $region116
        $region115: #{tpu_custom_call.1} parent=47 // pred_region
          %s2021 = ssub.s32 256, 256
          %2022 = vsyncadd [#allocation19], %s2021
          %s2023 = sshll.u32 [#allocation18], 4
          %s2024 = int_to_ptr.vmem [resolvable:$true] %s2023
          %2029 = dma.vmem_to_hbm [thread:$0]  %s2024, 256, %s9, [#allocation19], 128, 128, 8
        $region116: #{tpu_custom_call.1} parent=47 // pred_fallthru
          _
        // Predicated region
        $region117: #{tpu_custom_call.1} parent=47 // pred_check
          %p2030 = pneg %p237
        $region118: #{tpu_custom_call.1} parent=47 // pred_check_branch
          %2032 = sbr.rel (%p2030) target = $region120
        $region119: #{tpu_custom_call.1} parent=47 // pred_region
          %s2034 = ssub.s32 256, 256
          %2035 = vsyncadd [#allocation19], %s2034
          %s2036 = sshll.u32 [#allocation20], 4
          %s2037 = int_to_ptr.vmem [resolvable:$true] %s2036
          %2042 = dma.vmem_to_hbm [thread:$0]  %s2037, 256, %s10, [#allocation19], 128, 128, 8
        $region120: #{tpu_custom_call.1} parent=47 // pred_fallthru
          _
        // Predicated region
        $region121: #{tpu_custom_call.1} parent=47 // pred_check
          %p2043 = pneg %p195
        $region122: #{tpu_custom_call.1} parent=47 // pred_check_branch
          %2045 = sbr.rel (%p2043) target = $region124
        $region123: #{tpu_custom_call.1} parent=47 // pred_region
          %2046 = dma.done [#allocation9], 512
        $region124: #{tpu_custom_call.1} parent=47 // pred_fallthru
          _
        // Predicated region
        $region125: #{tpu_custom_call.1} parent=47 // pred_check
          %p2047 = pneg %p216
        $region126: #{tpu_custom_call.1} parent=47 // pred_check_branch
          %2049 = sbr.rel (%p2047) target = $region128
        $region127: #{tpu_custom_call.1} parent=47 // pred_region
          %2050 = dma.done [#allocation19], 256
        $region128: #{tpu_custom_call.1} parent=47 // pred_fallthru
          _
        // Predicated region
        $region129: #{tpu_custom_call.1} parent=47 // pred_check
          %p2051 = pneg %p237
        $region130: #{tpu_custom_call.1} parent=47 // pred_check_branch
          %2053 = sbr.rel (%p2051) target = $region132
        $region131: #{tpu_custom_call.1} parent=47 // pred_region
          %2054 = dma.done [#allocation19], 256
        $region132: #{tpu_custom_call.1} parent=47 // pred_fallthru
          _
      $region48: #{tpu_custom_call.1} parent=5 // pred_fallthru
        _
      %p2055 = scmp.le.s32.totalorder 2, %s25
      // Predicated region
      $region133: #{tpu_custom_call.1} parent=5 // pred_check
        %p2056 = pneg %p2055
      $region134: #{tpu_custom_call.1} parent=5 // pred_check_branch
        %2058 = sbr.rel (%p2056) target = $region136
      $region135: #{tpu_custom_call.1} parent=5 // pred_region
        %s2059 = ssub.s32 %s25, 2
      $region136: #{tpu_custom_call.1} parent=5 // pred_fallthru
        _
    $region6: #{tpu_custom_call.1} parent=1 // loop_footer
      %s29 = sadd.s32 1, %s25
    $region7: #{tpu_custom_call.1} parent=1 // loop_footer_branch
      %24 = sbr.rel target = $region3
    $region8: #{tpu_custom_call.1} parent=1 // loop_exit
      _
    %2060 = vsyncpa [#allocation8], 1
    %s2061 = scalar_lea.sflag [#allocation8], 1
    %2062 = vsyncpa %s2061, 1
    %2063 = vsyncpa [#allocation13], 1
    %2064 = vsyncpa [#allocation16], 1
    %s2065 = scalar_lea.sflag [#allocation16], 1
    %2066 = vsyncpa %s2065, 1
    %2067 = vsyncpa [#allocation9], 1
    %s2068 = scalar_lea.sflag [#allocation9], 1
    %2069 = vsyncpa %s2068, 1
    %2070 = vsyncpa [#allocation19], 1
    %2071 = vsyncpa [#allocation10], 1
    %s2072 = scalar_lea.sflag [#allocation10], 1
    %2073 = vsyncpa %s2072, 1
  %2074 = vsyncmov [#allocation6]
  %s2075 = vpop.sfrf %2074
  %p2076 = scmp.eq.s32.totalorder %s2075, 0
  %p2077 = pneg %p2076
  %2079 = shalt.err (%p2077)
  %s2080 = scalar_lea.sflag [#allocation6], 1
  %2081 = vsyncmov %s2080
  %s2082 = vpop.sfrf %2081
  %p2083 = scmp.eq.s32.totalorder %s2082, 0
  %p2084 = pneg %p2083
  %2086 = shalt.err (%p2084)
  %s2087 = scalar_lea.sflag [#allocation6], 2
  %2088 = vsyncmov %s2087
  %s2089 = vpop.sfrf %2088
  %p2090 = scmp.eq.s32.totalorder %s2089, 0
  %p2091 = pneg %p2090
  %2093 = shalt.err (%p2091)
  %s2094 = scalar_lea.sflag [#allocation6], 3
  %2095 = vsyncmov %s2094
  %s2096 = vpop.sfrf %2095
  %p2097 = scmp.eq.s32.totalorder %s2096, 0
  %p2098 = pneg %p2097
  %2100 = shalt.err (%p2098)
  %s2101 = scalar_lea.sflag [#allocation6], 4
  %2102 = vsyncmov %s2101
  %s2103 = vpop.sfrf %2102
  %p2104 = scmp.eq.s32.totalorder %s2103, 0
  %p2105 = pneg %p2104
  %2107 = shalt.err (%p2105)
  %s2108 = scalar_lea.sflag [#allocation6], 5
  %2109 = vsyncmov %s2108
  %s2110 = vpop.sfrf %2109
  %p2111 = scmp.eq.s32.totalorder %s2110, 0
  %p2112 = pneg %p2111
  %2114 = shalt.err (%p2112)
  %s2115 = scalar_lea.sflag [#allocation6], 6
  %2116 = vsyncmov %s2115
  %s2117 = vpop.sfrf %2116
  %p2118 = scmp.eq.s32.totalorder %s2117, 0
  %p2119 = pneg %p2118
  %2121 = shalt.err (%p2119)
  %s2122 = scalar_lea.sflag [#allocation6], 7
  %2123 = vsyncmov %s2122
  %s2124 = vpop.sfrf %2123
  %p2125 = scmp.eq.s32.totalorder %s2124, 0
  %p2126 = pneg %p2125
  %2128 = shalt.err (%p2126)

</llo_original>
